<compile_context>
chip_gen: v6e
topology: v6e:2x2x1
jax: 0.10.0
libtpu: 0.0.40
codegen_flags: <defaults>
</compile_context>

<pallas_src>
import numpy as np

import jax
import jax.numpy as jnp
from jax.experimental import pallas as pl
from jax.experimental.pallas import tpu as pltpu


_TM_MAX = 2048                      # row-tile cap (VMEM use stays ~14 MiB at this size)
_VMEM_LIMIT = 32 * 1024 * 1024      # bytes; safe on v5e/v6e (128 MiB) and v7x (64 MiB)


def _round_up(x, m):
    return (x + m - 1) // m * m


def _pick_tile(m, cap=_TM_MAX):
    """Row tile: multiple of 8, >=2 grid programs whenever m > 8 (v7x megacore)."""
    half = -(-m // 2)               # ceil(m / 2)
    return max(8, min(cap, _round_up(half, 8)))


# ---------------------------------------------------------------------------
# Pallas kernels
# ---------------------------------------------------------------------------
def _conv_pool_kernel(x_ref, w_ref, b_ref, o_ref):
    """Fused conv + bias + ReLU + 2x2 maxpool as ONE MXU pass.

    x_ref: (TM, K)   bf16 -- 6-row input windows (one row per pooled output row).
    w_ref: (K, 512)  bf16 -- 4 pool-tap expanded weights, each in a 128-lane group.
    b_ref: (1, 128)  f32  -- bias tiled over pooled output columns.
    o_ref: (TM, Nt)  bf16 -- pooled output rows (Nt = pooled_W * Cout <= 128).
    """
    y = jnp.dot(x_ref[...], w_ref[...], preferred_element_type=jnp.float32)  # (TM, 512)
    m = jnp.maximum(jnp.maximum(y[:, 0:128], y[:, 128:256]),
                    jnp.maximum(y[:, 256:384], y[:, 384:512]))
    z = jnp.maximum(m + b_ref[...], 0.0)          # bias + ReLU hoisted past the max
    o_ref[...] = z[:, : o_ref.shape[-1]].astype(o_ref.dtype)


def _mlp_kernel(x_ref,
                w1_ref, b1_ref, w2_ref, b2_ref, w3_ref, b3_ref, w4_ref, b4_ref,
                o_ref):
    """Fused conv3 (1x1-output conv == linear) + fc1 + fc2 + fc3.

    All weights stay resident in VMEM; activations never touch HBM.
    """
    def lin(h, w_ref, b_ref, relu):
        y = jnp.dot(h, w_ref[...], preferred_element_type=jnp.float32) + b_ref[...]
        if relu:
            return jnp.maximum(y, 0.0).astype(jnp.bfloat16)
        return y

    h = x_ref[...]                      # (TM, 400) bf16
    h = lin(h, w1_ref, b1_ref, True)    # conv3 + ReLU -> (TM, 32)
    h = lin(h, w2_ref, b2_ref, True)    # fc1   + ReLU -> (TM, 120)
    h = lin(h, w3_ref, b3_ref, True)    # fc2   + ReLU -> (TM, 84)
    o_ref[...] = lin(h, w4_ref, b4_ref, False)   # fc3 -> (TM, 10) f32


# ---------------------------------------------------------------------------
# Stage wrappers
# ---------------------------------------------------------------------------
def _conv_pool_stage(lhs, w_cat, b_row, n_out):
    """lhs: (M, K) bf16 row-windows; w_cat: (K, 512) bf16; b_row: (1, 128) f32.
    Returns (M, n_out) bf16 pooled activations."""
    M, K = lhs.shape
    tm = _pick_tile(M)
    mp = _round_up(M, tm)
    if mp != M:
        lhs = jnp.pad(lhs, ((0, mp - M), (0, 0)))

    flops = 2 * mp * K * w_cat.shape[1]
    bytes_accessed = (mp * K + K * w_cat.shape[1] + mp * n_out) * 2 + 512

    out = pl.pallas_call(
        _conv_pool_kernel,
        out_shape=jax.ShapeDtypeStruct((mp, n_out), jnp.bfloat16),
        grid=(mp // tm,),
        in_specs=[
            pl.BlockSpec((tm, K), lambda i: (i, 0)),
            pl.BlockSpec(w_cat.shape, lambda i: (0, 0)),
            pl.BlockSpec(b_row.shape, lambda i: (0, 0)),
        ],
        out_specs=pl.BlockSpec((tm, n_out), lambda i: (i, 0)),
        compiler_params=pltpu.CompilerParams(
            dimension_semantics=("parallel",),
            vmem_limit_bytes=_VMEM_LIMIT),
        cost_estimate=pl.CostEstimate(flops=int(flops), transcendentals=0,
                                      bytes_accessed=int(bytes_accessed)),
    )(lhs, w_cat, b_row)
    return out[:M]


def mlp_head(x, params):
    """x: (B, 400) bf16 channel-last-flattened pool2 output -> (B, 10) f32 logits."""
    B, K = x.shape
    tm = _pick_tile(B)
    mp = _round_up(B, tm)
    if mp != B:
        x = jnp.pad(x, ((0, mp - B), (0, 0)))

    ws = [params["c3_w"], params["fc1_w"], params["fc2_w"], params["fc3_w"]]
    bs = [params["c3_b"], params["fc1_b"], params["fc2_b"], params["fc3_b"]]
    args = [x]
    in_specs = [pl.BlockSpec((tm, K), lambda i: (i, 0))]
    for w, b in zip(ws, bs):
        in_specs.append(pl.BlockSpec(w.shape, lambda i: (0, 0)))
        in_specs.append(pl.BlockSpec(b.shape, lambda i: (0, 0)))
        args += [w, b]

    flops = 2 * mp * (400 * 32 + 32 * 120 + 120 * 84 + 84 * 10)
    bytes_accessed = mp * K * 2 + mp * 10 * 4 + sum(
        int(np.prod(w.shape)) * 2 for w in ws)

    out = pl.pallas_call(
        _mlp_kernel,
        out_shape=jax.ShapeDtypeStruct((mp, 10), jnp.float32),
        grid=(mp // tm,),
        in_specs=in_specs,
        out_specs=pl.BlockSpec((tm, 10), lambda i: (i, 0)),
        compiler_params=pltpu.CompilerParams(
            dimension_semantics=("parallel",),
            vmem_limit_bytes=_VMEM_LIMIT),
        cost_estimate=pl.CostEstimate(flops=int(flops), transcendentals=0,
                                      bytes_accessed=int(bytes_accessed)),
    )(*args)
    return out[:B]


# ---------------------------------------------------------------------------
# Weight expansion: fold (kw, cin) patch gather + 2x2 pool-tap split into a
# dense (K, 512) matrix.  Done ONCE at init on the host.
# ---------------------------------------------------------------------------
def _expand_conv_pool(w, b, *, in_w, out_q):
    """w: (Co, Ci, 5, 5) torch-layout conv weight (f32); b: (Co,).

    Row layout of the lhs this weight multiplies: d*in_w*Ci + w_pos*Ci + c,
    where d in [0,6) is the row offset inside a 6-row window starting at 2p.
    Column layout: group g = 2*t + s (pool-tap parity) occupies lanes
    [g*128, g*128 + out_q*Co); within a group the layout is q*Co + n.
    """
    co, ci, kh_sz, kw_sz = w.shape
    k = 6 * in_w * ci
    n_true = out_q * co
    assert n_true <= 128
    a = np.zeros((k, 4 * 128), np.float32)
    for t in (0, 1):
        for s in (0, 1):
            g = 2 * t + s
            for kh in range(kh_sz):
                d = t + kh
                for q in range(out_q):
                    for kw in range(kw_sz):
                        wp = 2 * q + s + kw
                        r0 = d * in_w * ci + wp * ci
                        c0 = g * 128 + q * co
                        a[r0:r0 + ci, c0:c0 + co] = w[:, :, kh, kw].T
    b_row = np.zeros((1, 128), np.float32)
    b_row[0, :n_true] = np.tile(b, out_q)
    return jnp.asarray(a, jnp.bfloat16), jnp.asarray(b_row, jnp.float32)


# ---------------------------------------------------------------------------
# Parameter init: torch-default uniform, then transform ONCE to kernel layout.
# ---------------------------------------------------------------------------
def init_params(key):
    def u(k, shape, fan_in):
        bound = 1.0 / (fan_in ** 0.5)
        return jax.random.uniform(k, shape, jnp.float32, -bound, bound)

    ks = jax.random.split(key, 12)
    c1_w = u(ks[0], (6, 3, 5, 5), 3 * 25);    c1_b = u(ks[1], (6,), 3 * 25)
    c2_w = u(ks[2], (16, 6, 5, 5), 6 * 25);   c2_b = u(ks[3], (16,), 6 * 25)
    c3_w = u(ks[4], (32, 16, 5, 5), 16 * 25); c3_b = u(ks[5], (32,), 16 * 25)
    f1_w = u(ks[6], (120, 32), 32);           f1_b = u(ks[7], (120,), 32)
    f2_w = u(ks[8], (84, 120), 120);          f2_b = u(ks[9], (84,), 120)
    f3_w = u(ks[10], (10, 84), 84);           f3_b = u(ks[11], (10,), 84)

    # conv1/conv2: expanded conv+pool matrices (4 pool-tap variants, N padded to 128).
    c1_A, c1_brow = _expand_conv_pool(np.asarray(c1_w), np.asarray(c1_b),
                                      in_w=32, out_q=14)
    c2_A, c2_brow = _expand_conv_pool(np.asarray(c2_w), np.asarray(c2_b),
                                      in_w=14, out_q=5)

    def conv_mat(w):
        # torch (Cout, Cin, kh, kw) -> (kh*kw*Cin, Cout), row order (kh, kw, ci)
        co, ci, kh, kw = w.shape
        return w.transpose(2, 3, 1, 0).reshape(kh * kw * ci, co).astype(jnp.bfloat16)

    def fc_mat(w):
        # torch (out, in) -> (in, out)
        return w.T.astype(jnp.bfloat16)

    def brow(b):
        return b.reshape(1, -1).astype(jnp.float32)

    return {
        "c1_A": c1_A, "c1_b": c1_brow,
        "c2_A": c2_A, "c2_b": c2_brow,
        "c3_w": conv_mat(c3_w), "c3_b": brow(c3_b),   # conv3 output is 1x1 -> linear
        "fc1_w": fc_mat(f1_w), "fc1_b": brow(f1_b),
        "fc2_w": fc_mat(f2_w), "fc2_b": brow(f2_b),
        "fc3_w": fc_mat(f3_w), "fc3_b": brow(f3_b),
    }


# ---------------------------------------------------------------------------
# Forward pass (mirrors Net.forward)
# ---------------------------------------------------------------------------
@jax.jit
def net_forward(params, x):
    # x: (B, 3, 32, 32) NCHW float32 (PyTorch interface).
    B = x.shape[0]
    # NHWC with W and C fused into the lane dim: (B, 32, 96), bf16.
    xr = jnp.transpose(x, (0, 2, 3, 1)).reshape(B, 32, 32 * 3).astype(jnp.bfloat16)

    # conv1 + ReLU + pool: 6-row windows (one per pooled output row) -> (B*14, 576).
    win1 = jnp.stack([xr[:, d:d + 28:2, :] for d in range(6)], axis=2)   # (B,14,6,96)
    lhs1 = win1.reshape(B * 14, 6 * 96)
    p1 = _conv_pool_stage(lhs1, params["c1_A"], params["c1_b"], 14 * 6)  # (B*14, 84)

    # conv2 + ReLU + pool on the (14, 14*6) fused layout -> (B*5, 504).
    p1 = p1.reshape(B, 14, 14 * 6)
    win2 = jnp.stack([p1[:, d:d + 10:2, :] for d in range(6)], axis=2)   # (B,5,6,84)
    lhs2 = win2.reshape(B * 5, 6 * 84)
    p2 = _conv_pool_stage(lhs2, params["c2_A"], params["c2_b"], 5 * 16)  # (B*5, 80)

    # conv3 (->1x1) + fc1 + fc2 + fc3; flatten order is (h, w, c).
    flat = p2.reshape(B, 400)                                            # bf16
    return mlp_head(flat, params)                                        # (B, 10) f32


if __name__ == "__main__":
    key = jax.random.PRNGKey(0)
    k_params, k_x = jax.random.split(key)
    params = init_params(k_params)
    # Spatial must be 32x32 so conv3 produces 1x1 (matches fc1 = 32*1*1).
    x = jax.random.normal(k_x, (2, 3, 32, 32), jnp.float32)

    out = net_forward(params, x)
    out = jax.block_until_ready(out)
    assert out.shape == (2, 10) and out.dtype == jnp.float32
    assert bool(jnp.all(jnp.isfinite(out)))
    print("KERNEL_OK")
</pallas_src>

<mosaic_0001>
module attributes {stable_mosaic.version = 11 : i64} {
  func.func @_conv_pool_kernel(%arg0: i32, %arg1: memref<16x576xbf16, #tpu.memory_space<vmem>>, %arg2: memref<576x512xbf16, #tpu.memory_space<vmem>>, %arg3: memref<1x128xf32, #tpu.memory_space<vmem>>, %arg4: memref<16x84xbf16, #tpu.memory_space<vmem>>) attributes {dimension_semantics = [#tpu.dimension_semantics<parallel>], iteration_bounds = array<i64: 2>, scalar_prefetch = 0 : i64, scratch_operands = 0 : i64, tpu.core_type = #tpu.core_type<tc>, window_params = [{transform_indices = @transform_0, window_bounds = array<i64: 16, 576>}, {pipeline_mode = #tpu.pipeline_mode<synchronous>, transform_indices = @transform_1, window_bounds = array<i64: 576, 512>}, {pipeline_mode = #tpu.pipeline_mode<synchronous>, transform_indices = @transform_2, window_bounds = array<i64: 1, 128>}, {transform_indices = @transform_3, window_bounds = array<i64: 16, 84>}]} {
    %c0 = arith.constant 0 : index
    %c0_0 = arith.constant 0 : index
    %0 = vector.load %arg1[%c0, %c0_0] : memref<16x576xbf16, #tpu.memory_space<vmem>>, vector<16x576xbf16>
    %c0_1 = arith.constant 0 : index
    %c0_2 = arith.constant 0 : index
    %1 = vector.load %arg2[%c0_1, %c0_2] : memref<576x512xbf16, #tpu.memory_space<vmem>>, vector<576x512xbf16>
    %cst = arith.constant dense<0.000000e+00> : vector<16x512xf32>
    %2 = tpu.matmul %0, %1, %cst {dimension_numbers = #tpu.dot_dimension_numbers<[1], [0], [0], [1], [0, 0, 1, 1], [], []>} : vector<16x576xbf16>, vector<576x512xbf16>, vector<16x512xf32> -> vector<16x512xf32>
    %3 = vector.extract_strided_slice %2 {offsets = [0, 0], sizes = [16, 128], strides = [1, 1]} : vector<16x512xf32> to vector<16x128xf32>
    %4 = vector.extract_strided_slice %2 {offsets = [0, 128], sizes = [16, 128], strides = [1, 1]} : vector<16x512xf32> to vector<16x128xf32>
    %5 = arith.maximumf %3, %4 : vector<16x128xf32>
    %6 = vector.extract_strided_slice %2 {offsets = [0, 256], sizes = [16, 128], strides = [1, 1]} : vector<16x512xf32> to vector<16x128xf32>
    %7 = vector.extract_strided_slice %2 {offsets = [0, 384], sizes = [16, 128], strides = [1, 1]} : vector<16x512xf32> to vector<16x128xf32>
    %8 = arith.maximumf %6, %7 : vector<16x128xf32>
    %9 = arith.maximumf %5, %8 : vector<16x128xf32>
    %c0_3 = arith.constant 0 : index
    %c0_4 = arith.constant 0 : index
    %10 = vector.load %arg3[%c0_3, %c0_4] : memref<1x128xf32, #tpu.memory_space<vmem>>, vector<1x128xf32>
    %11 = vector.broadcast %10 : vector<1x128xf32> to vector<16x128xf32>
    %12 = arith.addf %9, %11 : vector<16x128xf32>
    %cst_5 = arith.constant 0.000000e+00 : f32
    %13 = vector.broadcast %cst_5 : f32 to vector<16x128xf32>
    %14 = arith.maximumf %12, %13 : vector<16x128xf32>
    %15 = vector.extract_strided_slice %14 {offsets = [0, 0], sizes = [16, 84], strides = [1, 1]} : vector<16x128xf32> to vector<16x84xf32>
    %16 = arith.truncf %15 : vector<16x84xf32> to vector<16x84xbf16>
    %c0_6 = arith.constant 0 : index
    %c0_7 = arith.constant 0 : index
    %17 = vector.load %arg4[%c0_6, %c0_7] : memref<16x84xbf16, #tpu.memory_space<vmem>>, vector<16x84xbf16>
    tpu.vector_store %arg4[%c0_6, %c0_7], %16 {strides = array<i32>} : memref<16x84xbf16, #tpu.memory_space<vmem>>, vector<16x84xbf16>,
    return
  }
  func.func @transform_0(%arg0: i32) -> (i32, i32) {
    %c0_i32 = arith.constant 0 : i32
    %c0_i32_0 = arith.constant 0 : i32
    return %arg0, %c0_i32 : i32, i32
  }
  func.func @transform_1(%arg0: i32) -> (i32, i32) {
    %c0_i32 = arith.constant 0 : i32
    %c0_i32_0 = arith.constant 0 : i32
    %c0_i32_1 = arith.constant 0 : i32
    return %c0_i32, %c0_i32_0 : i32, i32
  }
  func.func @transform_2(%arg0: i32) -> (i32, i32) {
    %c0_i32 = arith.constant 0 : i32
    %c0_i32_0 = arith.constant 0 : i32
    %c0_i32_1 = arith.constant 0 : i32
    return %c0_i32, %c0_i32_0 : i32, i32
  }
  func.func @transform_3(%arg0: i32) -> (i32, i32) {
    %c0_i32 = arith.constant 0 : i32
    %c0_i32_0 = arith.constant 0 : i32
    return %arg0, %c0_i32 : i32, i32
  }
}

module attributes {stable_mosaic.version = 11 : i64} {
  func.func @_conv_pool_kernel(%arg0: i32, %arg1: memref<8x504xbf16, #tpu.memory_space<vmem>>, %arg2: memref<504x512xbf16, #tpu.memory_space<vmem>>, %arg3: memref<1x128xf32, #tpu.memory_space<vmem>>, %arg4: memref<8x80xbf16, #tpu.memory_space<vmem>>) attributes {dimension_semantics = [#tpu.dimension_semantics<parallel>], iteration_bounds = array<i64: 2>, scalar_prefetch = 0 : i64, scratch_operands = 0 : i64, tpu.core_type = #tpu.core_type<tc>, window_params = [{transform_indices = @transform_0, window_bounds = array<i64: 8, 504>}, {pipeline_mode = #tpu.pipeline_mode<synchronous>, transform_indices = @transform_1, window_bounds = array<i64: 504, 512>}, {pipeline_mode = #tpu.pipeline_mode<synchronous>, transform_indices = @transform_2, window_bounds = array<i64: 1, 128>}, {transform_indices = @transform_3, window_bounds = array<i64: 8, 80>}]} {
    %c0 = arith.constant 0 : index
    %c0_0 = arith.constant 0 : index
    %0 = vector.load %arg1[%c0, %c0_0] : memref<8x504xbf16, #tpu.memory_space<vmem>>, vector<8x504xbf16>
    %c0_1 = arith.constant 0 : index
    %c0_2 = arith.constant 0 : index
    %1 = vector.load %arg2[%c0_1, %c0_2] : memref<504x512xbf16, #tpu.memory_space<vmem>>, vector<504x512xbf16>
    %cst = arith.constant dense<0.000000e+00> : vector<8x512xf32>
    %2 = tpu.matmul %0, %1, %cst {dimension_numbers = #tpu.dot_dimension_numbers<[1], [0], [0], [1], [0, 0, 1, 1], [], []>} : vector<8x504xbf16>, vector<504x512xbf16>, vector<8x512xf32> -> vector<8x512xf32>
    %3 = vector.extract_strided_slice %2 {offsets = [0, 0], sizes = [8, 128], strides = [1, 1]} : vector<8x512xf32> to vector<8x128xf32>
    %4 = vector.extract_strided_slice %2 {offsets = [0, 128], sizes = [8, 128], strides = [1, 1]} : vector<8x512xf32> to vector<8x128xf32>
    %5 = arith.maximumf %3, %4 : vector<8x128xf32>
    %6 = vector.extract_strided_slice %2 {offsets = [0, 256], sizes = [8, 128], strides = [1, 1]} : vector<8x512xf32> to vector<8x128xf32>
    %7 = vector.extract_strided_slice %2 {offsets = [0, 384], sizes = [8, 128], strides = [1, 1]} : vector<8x512xf32> to vector<8x128xf32>
    %8 = arith.maximumf %6, %7 : vector<8x128xf32>
    %9 = arith.maximumf %5, %8 : vector<8x128xf32>
    %c0_3 = arith.constant 0 : index
    %c0_4 = arith.constant 0 : index
    %10 = vector.load %arg3[%c0_3, %c0_4] : memref<1x128xf32, #tpu.memory_space<vmem>>, vector<1x128xf32>
    %11 = vector.broadcast %10 : vector<1x128xf32> to vector<8x128xf32>
    %12 = arith.addf %9, %11 : vector<8x128xf32>
    %cst_5 = arith.constant 0.000000e+00 : f32
    %13 = vector.broadcast %cst_5 : f32 to vector<8x128xf32>
    %14 = arith.maximumf %12, %13 : vector<8x128xf32>
    %15 = vector.extract_strided_slice %14 {offsets = [0, 0], sizes = [8, 80], strides = [1, 1]} : vector<8x128xf32> to vector<8x80xf32>
    %16 = arith.truncf %15 : vector<8x80xf32> to vector<8x80xbf16>
    %c0_6 = arith.constant 0 : index
    %c0_7 = arith.constant 0 : index
    %17 = vector.load %arg4[%c0_6, %c0_7] : memref<8x80xbf16, #tpu.memory_space<vmem>>, vector<8x80xbf16>
    tpu.vector_store %arg4[%c0_6, %c0_7], %16 {strides = array<i32>} : memref<8x80xbf16, #tpu.memory_space<vmem>>, vector<8x80xbf16>,
    return
  }
  func.func @transform_0(%arg0: i32) -> (i32, i32) {
    %c0_i32 = arith.constant 0 : i32
    %c0_i32_0 = arith.constant 0 : i32
    return %arg0, %c0_i32 : i32, i32
  }
  func.func @transform_1(%arg0: i32) -> (i32, i32) {
    %c0_i32 = arith.constant 0 : i32
    %c0_i32_0 = arith.constant 0 : i32
    %c0_i32_1 = arith.constant 0 : i32
    return %c0_i32, %c0_i32_0 : i32, i32
  }
  func.func @transform_2(%arg0: i32) -> (i32, i32) {
    %c0_i32 = arith.constant 0 : i32
    %c0_i32_0 = arith.constant 0 : i32
    %c0_i32_1 = arith.constant 0 : i32
    return %c0_i32, %c0_i32_0 : i32, i32
  }
  func.func @transform_3(%arg0: i32) -> (i32, i32) {
    %c0_i32 = arith.constant 0 : i32
    %c0_i32_0 = arith.constant 0 : i32
    return %arg0, %c0_i32 : i32, i32
  }
}

module attributes {stable_mosaic.version = 11 : i64} {
  func.func @_mlp_kernel(%arg0: i32, %arg1: memref<8x400xbf16, #tpu.memory_space<vmem>>, %arg2: memref<400x32xbf16, #tpu.memory_space<vmem>>, %arg3: memref<1x32xf32, #tpu.memory_space<vmem>>, %arg4: memref<32x120xbf16, #tpu.memory_space<vmem>>, %arg5: memref<1x120xf32, #tpu.memory_space<vmem>>, %arg6: memref<120x84xbf16, #tpu.memory_space<vmem>>, %arg7: memref<1x84xf32, #tpu.memory_space<vmem>>, %arg8: memref<84x10xbf16, #tpu.memory_space<vmem>>, %arg9: memref<1x10xf32, #tpu.memory_space<vmem>>, %arg10: memref<8x10xf32, #tpu.memory_space<vmem>>) attributes {dimension_semantics = [#tpu.dimension_semantics<parallel>], iteration_bounds = array<i64: 1>, scalar_prefetch = 0 : i64, scratch_operands = 0 : i64, tpu.core_type = #tpu.core_type<tc>, window_params = [{transform_indices = @transform_0, window_bounds = array<i64: 8, 400>}, {pipeline_mode = #tpu.pipeline_mode<synchronous>, transform_indices = @transform_1, window_bounds = array<i64: 400, 32>}, {pipeline_mode = #tpu.pipeline_mode<synchronous>, transform_indices = @transform_2, window_bounds = array<i64: 1, 32>}, {pipeline_mode = #tpu.pipeline_mode<synchronous>, transform_indices = @transform_3, window_bounds = array<i64: 32, 120>}, {pipeline_mode = #tpu.pipeline_mode<synchronous>, transform_indices = @transform_4, window_bounds = array<i64: 1, 120>}, {pipeline_mode = #tpu.pipeline_mode<synchronous>, transform_indices = @transform_5, window_bounds = array<i64: 120, 84>}, {pipeline_mode = #tpu.pipeline_mode<synchronous>, transform_indices = @transform_6, window_bounds = array<i64: 1, 84>}, {pipeline_mode = #tpu.pipeline_mode<synchronous>, transform_indices = @transform_7, window_bounds = array<i64: 84, 10>}, {pipeline_mode = #tpu.pipeline_mode<synchronous>, transform_indices = @transform_8, window_bounds = array<i64: 1, 10>}, {transform_indices = @transform_9, window_bounds = array<i64: 8, 10>}]} {
    %c0 = arith.constant 0 : index
    %c0_0 = arith.constant 0 : index
    %0 = vector.load %arg1[%c0, %c0_0] : memref<8x400xbf16, #tpu.memory_space<vmem>>, vector<8x400xbf16>
    %c0_1 = arith.constant 0 : index
    %c0_2 = arith.constant 0 : index
    %1 = vector.load %arg2[%c0_1, %c0_2] : memref<400x32xbf16, #tpu.memory_space<vmem>>, vector<400x32xbf16>
    %cst = arith.constant dense<0.000000e+00> : vector<8x32xf32>
    %2 = tpu.matmul %0, %1, %cst {dimension_numbers = #tpu.dot_dimension_numbers<[1], [0], [0], [1], [0, 0, 1, 1], [], []>} : vector<8x400xbf16>, vector<400x32xbf16>, vector<8x32xf32> -> vector<8x32xf32>
    %c0_3 = arith.constant 0 : index
    %c0_4 = arith.constant 0 : index
    %3 = vector.load %arg3[%c0_3, %c0_4] : memref<1x32xf32, #tpu.memory_space<vmem>>, vector<1x32xf32>
    %4 = vector.broadcast %3 : vector<1x32xf32> to vector<8x32xf32>
    %5 = arith.addf %2, %4 : vector<8x32xf32>
    %cst_5 = arith.constant 0.000000e+00 : f32
    %6 = vector.broadcast %cst_5 : f32 to vector<8x32xf32>
    %7 = arith.maximumf %5, %6 : vector<8x32xf32>
    %8 = arith.truncf %7 : vector<8x32xf32> to vector<8x32xbf16>
    %c0_6 = arith.constant 0 : index
    %c0_7 = arith.constant 0 : index
    %9 = vector.load %arg4[%c0_6, %c0_7] : memref<32x120xbf16, #tpu.memory_space<vmem>>, vector<32x120xbf16>
    %cst_8 = arith.constant dense<0.000000e+00> : vector<8x120xf32>
    %10 = tpu.matmul %8, %9, %cst_8 {dimension_numbers = #tpu.dot_dimension_numbers<[1], [0], [0], [1], [0, 0, 1, 1], [], []>} : vector<8x32xbf16>, vector<32x120xbf16>, vector<8x120xf32> -> vector<8x120xf32>
    %c0_9 = arith.constant 0 : index
    %c0_10 = arith.constant 0 : index
    %11 = vector.load %arg5[%c0_9, %c0_10] : memref<1x120xf32, #tpu.memory_space<vmem>>, vector<1x120xf32>
    %12 = vector.broadcast %11 : vector<1x120xf32> to vector<8x120xf32>
    %13 = arith.addf %10, %12 : vector<8x120xf32>
    %cst_11 = arith.constant 0.000000e+00 : f32
    %14 = vector.broadcast %cst_11 : f32 to vector<8x120xf32>
    %15 = arith.maximumf %13, %14 : vector<8x120xf32>
    %16 = arith.truncf %15 : vector<8x120xf32> to vector<8x120xbf16>
    %c0_12 = arith.constant 0 : index
    %c0_13 = arith.constant 0 : index
    %17 = vector.load %arg6[%c0_12, %c0_13] : memref<120x84xbf16, #tpu.memory_space<vmem>>, vector<120x84xbf16>
    %cst_14 = arith.constant dense<0.000000e+00> : vector<8x84xf32>
    %18 = tpu.matmul %16, %17, %cst_14 {dimension_numbers = #tpu.dot_dimension_numbers<[1], [0], [0], [1], [0, 0, 1, 1], [], []>} : vector<8x120xbf16>, vector<120x84xbf16>, vector<8x84xf32> -> vector<8x84xf32>
    %c0_15 = arith.constant 0 : index
    %c0_16 = arith.constant 0 : index
    %19 = vector.load %arg7[%c0_15, %c0_16] : memref<1x84xf32, #tpu.memory_space<vmem>>, vector<1x84xf32>
    %20 = vector.broadcast %19 : vector<1x84xf32> to vector<8x84xf32>
    %21 = arith.addf %18, %20 : vector<8x84xf32>
    %cst_17 = arith.constant 0.000000e+00 : f32
    %22 = vector.broadcast %cst_17 : f32 to vector<8x84xf32>
    %23 = arith.maximumf %21, %22 : vector<8x84xf32>
    %24 = arith.truncf %23 : vector<8x84xf32> to vector<8x84xbf16>
    %c0_18 = arith.constant 0 : index
    %c0_19 = arith.constant 0 : index
    %25 = vector.load %arg8[%c0_18, %c0_19] : memref<84x10xbf16, #tpu.memory_space<vmem>>, vector<84x10xbf16>
    %cst_20 = arith.constant dense<0.000000e+00> : vector<8x10xf32>
    %26 = tpu.matmul %24, %25, %cst_20 {dimension_numbers = #tpu.dot_dimension_numbers<[1], [0], [0], [1], [0, 0, 1, 1], [], []>} : vector<8x84xbf16>, vector<84x10xbf16>, vector<8x10xf32> -> vector<8x10xf32>
    %c0_21 = arith.constant 0 : index
    %c0_22 = arith.constant 0 : index
    %27 = vector.load %arg9[%c0_21, %c0_22] : memref<1x10xf32, #tpu.memory_space<vmem>>, vector<1x10xf32>
    %28 = vector.broadcast %27 : vector<1x10xf32> to vector<8x10xf32>
    %29 = arith.addf %26, %28 : vector<8x10xf32>
    %c0_23 = arith.constant 0 : index
    %c0_24 = arith.constant 0 : index
    %30 = vector.load %arg10[%c0_23, %c0_24] : memref<8x10xf32, #tpu.memory_space<vmem>>, vector<8x10xf32>
    tpu.vector_store %arg10[%c0_23, %c0_24], %29 {strides = array<i32>} : memref<8x10xf32, #tpu.memory_space<vmem>>, vector<8x10xf32>,
    return
  }
  func.func @transform_0(%arg0: i32) -> (i32, i32) {
    %c0_i32 = arith.constant 0 : i32
    %c0_i32_0 = arith.constant 0 : i32
    return %arg0, %c0_i32 : i32, i32
  }
  func.func @transform_1(%arg0: i32) -> (i32, i32) {
    %c0_i32 = arith.constant 0 : i32
    %c0_i32_0 = arith.constant 0 : i32
    %c0_i32_1 = arith.constant 0 : i32
    return %c0_i32, %c0_i32_0 : i32, i32
  }
  func.func @transform_2(%arg0: i32) -> (i32, i32) {
    %c0_i32 = arith.constant 0 : i32
    %c0_i32_0 = arith.constant 0 : i32
    %c0_i32_1 = arith.constant 0 : i32
    return %c0_i32, %c0_i32_0 : i32, i32
  }
  func.func @transform_3(%arg0: i32) -> (i32, i32) {
    %c0_i32 = arith.constant 0 : i32
    %c0_i32_0 = arith.constant 0 : i32
    %c0_i32_1 = arith.constant 0 : i32
    return %c0_i32, %c0_i32_0 : i32, i32
  }
  func.func @transform_4(%arg0: i32) -> (i32, i32) {
    %c0_i32 = arith.constant 0 : i32
    %c0_i32_0 = arith.constant 0 : i32
    %c0_i32_1 = arith.constant 0 : i32
    return %c0_i32, %c0_i32_0 : i32, i32
  }
  func.func @transform_5(%arg0: i32) -> (i32, i32) {
    %c0_i32 = arith.constant 0 : i32
    %c0_i32_0 = arith.constant 0 : i32
    %c0_i32_1 = arith.constant 0 : i32
    return %c0_i32, %c0_i32_0 : i32, i32
  }
  func.func @transform_6(%arg0: i32) -> (i32, i32) {
    %c0_i32 = arith.constant 0 : i32
    %c0_i32_0 = arith.constant 0 : i32
    %c0_i32_1 = arith.constant 0 : i32
    return %c0_i32, %c0_i32_0 : i32, i32
  }
  func.func @transform_7(%arg0: i32) -> (i32, i32) {
    %c0_i32 = arith.constant 0 : i32
    %c0_i32_0 = arith.constant 0 : i32
    %c0_i32_1 = arith.constant 0 : i32
    return %c0_i32, %c0_i32_0 : i32, i32
  }
  func.func @transform_8(%arg0: i32) -> (i32, i32) {
    %c0_i32 = arith.constant 0 : i32
    %c0_i32_0 = arith.constant 0 : i32
    %c0_i32_1 = arith.constant 0 : i32
    return %c0_i32, %c0_i32_0 : i32, i32
  }
  func.func @transform_9(%arg0: i32) -> (i32, i32) {
    %c0_i32 = arith.constant 0 : i32
    %c0_i32_0 = arith.constant 0 : i32
    return %arg0, %c0_i32 : i32, i32
  }
}

</mosaic_0001>

<llo_original>
// kernel: net_forward.3
$region0: #{net_forward.3}
  #allocation0 [shape = 'u32[]', space=smem, size = 0x4, offset = 0x4, fixed_abs, tag = 'smem constant byte address 0x4 - core index']
  #allocation1 [shape = 'u32[144,128]{1,0:T(1,128)}', space=vmem, size = 0x12000, scoped, tag = 'internal scratch']
  %s0 = inlined_call_operand.vmem [shape: bf16[32,576], index: 0, kind: input, shape index: {}]
  %s1 = inlined_call_operand.vmem [shape: bf16[576,512], index: 1, kind: input, shape index: {}]
  %s2 = inlined_call_operand.vmem [shape: f32[1,128], index: 2, kind: input, shape index: {}]
  %s3 = inlined_call_operand.vmem [shape: bf16[32,84], index: 3, kind: output, shape index: {}]
  %s4 = sld [smem:[#allocation0]]
  $region45: #{net_forward.3} parent=0
    _
  %s6 = ssub.s32 1, %s4
  %s7 = scalar_select 0, %s6, %s4
  loop: start=0, step=1, limit=4
  $region2: #{net_forward.3} parent=0 // loop_pre_header
    _
  $region3: #{net_forward.3} parent=0 // loop_header
    %s9 = sphi 0, %s13
    %p10 = scmp.ge.s32.totalorder %s9, 4
    %s19 = sphi 0, %s21
    %s22 = sphi 0, %s19
    %s23 = sphi 0, %s22
    %s39 = sphi 0, %s23
    %s43 = sphi 0, %s43
    %s45 = sphi 0, %s43
    %s46 = sphi 0, %s45
    %s60 = sphi 0, %s46
    %s64 = sphi 0, %s64
    %s66 = sphi 0, %s64
    %s67 = sphi 0, %s66
    %s81 = sphi 0, %s67
    %s87 = sphi 0, %s89
    %s90 = sphi 0, %s87
    %s91 = sphi 0, %s90
    %s107 = sphi 0, %s91
  $region4: #{net_forward.3} parent=0 // loop_header_branch
    %12 = sbr.rel (%p10) target = $region8
  $region5: #{net_forward.3} parent=0 // loop_body
    %s14 = ssub.s32 %s9, 1
    %s15 = ssub.s32 %s9, 2
    %s16 = sadd.s32 %s9, 1
    %s17 = ssub.s32 %s9, %s16
    %p18 = scmp.eq.s32.totalorder %s17, 0
    %s20 = sadd.s32 %s19, 1
    %s21 = scalar_select %p18, %s19, %s20
    %p24 = pneg %p18
    %p25 = scmp.eq.s32.totalorder %s9, 1
    %p26 = por %p24, %p25
    %p27 = scmp.ne.s32.totalorder %s19, %s22
    %p28 = scmp.eq.s32.totalorder %s9, 0
    %p29 = por %p27, %p28
    %p30 = scmp.ne.s32.totalorder %s19, %s22
    %p31 = scmp.eq.s32.totalorder %s14, 1
    %p32 = por %p30, %p31
    %p33 = scmp.ne.s32.totalorder %s22, %s23
    %p34 = scmp.eq.s32.totalorder %s14, 0
    %p35 = por %p33, %p34
    %p36 = scmp.ne.s32.totalorder %s22, %s23
    %p37 = scmp.eq.s32.totalorder %s15, 1
    %p38 = por %p36, %p37
    %p40 = scmp.ne.s32.totalorder %s23, %s39
    %p41 = scmp.eq.s32.totalorder %s15, 0
    %p42 = por %p40, %p41
    %s44 = sadd.s32 %s43, 1
    %p47 = scmp.eq.s32.totalorder %s9, 1
    %p48 = scmp.ne.s32.totalorder %s43, %s45
    %p49 = scmp.eq.s32.totalorder %s9, 0
    %p50 = por %p48, %p49
    %p51 = scmp.ne.s32.totalorder %s43, %s45
    %p52 = scmp.eq.s32.totalorder %s14, 1
    %p53 = por %p51, %p52
    %p54 = scmp.ne.s32.totalorder %s45, %s46
    %p55 = scmp.eq.s32.totalorder %s14, 0
    %p56 = por %p54, %p55
    %p57 = scmp.ne.s32.totalorder %s45, %s46
    %p58 = scmp.eq.s32.totalorder %s15, 1
    %p59 = por %p57, %p58
    %p61 = scmp.ne.s32.totalorder %s46, %s60
    %p62 = scmp.eq.s32.totalorder %s15, 0
    %p63 = por %p61, %p62
    %s65 = sadd.s32 %s64, 1
    %p68 = scmp.eq.s32.totalorder %s9, 1
    %p69 = scmp.ne.s32.totalorder %s64, %s66
    %p70 = scmp.eq.s32.totalorder %s9, 0
    %p71 = por %p69, %p70
    %p72 = scmp.ne.s32.totalorder %s64, %s66
    %p73 = scmp.eq.s32.totalorder %s14, 1
    %p74 = por %p72, %p73
    %p75 = scmp.ne.s32.totalorder %s66, %s67
    %p76 = scmp.eq.s32.totalorder %s14, 0
    %p77 = por %p75, %p76
    %p78 = scmp.ne.s32.totalorder %s66, %s67
    %p79 = scmp.eq.s32.totalorder %s15, 1
    %p80 = por %p78, %p79
    %p82 = scmp.ne.s32.totalorder %s67, %s81
    %p83 = scmp.eq.s32.totalorder %s15, 0
    %p84 = por %p82, %p83
    %s85 = ssub.s32 %s9, %s16
    %p86 = scmp.eq.s32.totalorder %s85, 0
    %s88 = sadd.s32 %s87, 1
    %s89 = scalar_select %p86, %s87, %s88
    %p92 = pneg %p86
    %p93 = scmp.eq.s32.totalorder %s9, 1
    %p94 = por %p92, %p93
    %p95 = scmp.ne.s32.totalorder %s87, %s90
    %p96 = scmp.eq.s32.totalorder %s9, 0
    %p97 = por %p95, %p96
    %p98 = scmp.ne.s32.totalorder %s87, %s90
    %p99 = scmp.eq.s32.totalorder %s14, 1
    %p100 = por %p98, %p99
    %p101 = scmp.ne.s32.totalorder %s90, %s91
    %p102 = scmp.eq.s32.totalorder %s14, 0
    %p103 = por %p101, %p102
    %p104 = scmp.ne.s32.totalorder %s90, %s91
    %p105 = scmp.eq.s32.totalorder %s15, 1
    %p106 = por %p104, %p105
    %p108 = scmp.ne.s32.totalorder %s91, %s107
    %p109 = scmp.eq.s32.totalorder %s15, 0
    %p110 = por %p108, %p109
    %p111 = scmp.le.s32.totalorder 1, %s9
    %p112 = scmp.lt.s32.totalorder %s9, 3
    %p113 = pnand %p111, %p112
    %p114 = pneg %p113
    // Predicated region
    $region9: #{net_forward.3} parent=5 // pred_check
      _
    $region10: #{net_forward.3} parent=5 // pred_check_branch
      %116 = sbr.rel (%p113) target = $region12
    $region11: #{net_forward.3} parent=5 // pred_region
      %s117 = ssub.s32 %s9, 1
      // Predicated region
      $region13: #{net_forward.3} parent=11 // pred_check
        %p118 = pneg %p56
      $region14: #{net_forward.3} parent=11 // pred_check_branch
        %120 = sbr.rel (%p118) target = $region16
      $region15: #{net_forward.3} parent=11 // pred_region
        _
      $region16: #{net_forward.3} parent=11 // pred_fallthru
        _
      // Predicated region
      $region17: #{net_forward.3} parent=11 // pred_check
        %p121 = pneg %p77
      $region18: #{net_forward.3} parent=11 // pred_check_branch
        %123 = sbr.rel (%p121) target = $region20
      $region19: #{net_forward.3} parent=11 // pred_region
        _
      $region20: #{net_forward.3} parent=11 // pred_fallthru
        _
    $region12: #{net_forward.3} parent=5 // pred_fallthru
      _
    %p124 = scmp.lt.s32.totalorder %s9, 2
    // Predicated region
    $region21: #{net_forward.3} parent=5 // pred_check
      %p125 = pneg %p124
    $region22: #{net_forward.3} parent=5 // pred_check_branch
      %127 = sbr.rel (%p125) target = $region24
    $region23: #{net_forward.3} parent=5 // pred_region
      // Predicated region
      $region25: #{net_forward.3} parent=23 // pred_check
        %p128 = pneg %p29
      $region26: #{net_forward.3} parent=23 // pred_check_branch
        %130 = sbr.rel (%p128) target = $region28
      $region27: #{net_forward.3} parent=23 // pred_region
        %s131 = smul.u32 2, %s9
        %p132 = scmp.lt.s32.totalorder %s131, 3
        %s133 = scalar_select %p132, %s131, 3
        %s134 = smul.addr %s133, 5
        %s135 = smul.addr %s134, 4
        %s136 = scalar_lea.vmem %s0, %s135
        %s137 = smul.u32 2, %s9
      $region28: #{net_forward.3} parent=23 // pred_fallthru
        _
    $region24: #{net_forward.3} parent=5 // pred_fallthru
      _
    %p138 = scmp.le.s32.totalorder 1, %s9
    %p139 = scmp.lt.s32.totalorder %s9, 3
    %p140 = pnand %p138, %p139
    %p141 = pneg %p140
    // Predicated region
    $region29: #{net_forward.3} parent=5 // pred_check
      _
    $region30: #{net_forward.3} parent=5 // pred_check_branch
      %143 = sbr.rel (%p140) target = $region32
    $region31: #{net_forward.3} parent=5 // pred_region
      %s144 = ssub.s32 %s9, 1
      %s145 = smul.u32 2, %s14
      %p146 = scmp.lt.s32.totalorder %s145, 3
      %s147 = scalar_select %p146, %s145, 3
      %s148 = smul.addr %s147, 5
      %s149 = smul.addr %s148, 4
      %s150 = scalar_lea.vmem %s0, %s149
      %p151 = pneg %p35
      %p152 = pneg %p32
      %p153 = pneg %p56
      %p154 = pneg %p53
      %p155 = pneg %p77
      %p156 = pneg %p74
      %p157 = pneg %p103
      %p158 = pneg %p100
      %s159 = smul.u32 2, %s14
      %p160 = scmp.lt.s32.totalorder %s159, 3
      %s161 = scalar_select %p160, %s159, 3
      %s162 = smul.addr %s161, 4
      %s163 = scalar_lea.vmem %s3, %s162
      %s164 = smul.u32 2, %s14
      %p165 = scmp.lt.s32.totalorder %s164, 3
      %s166 = scalar_select %p165, %s164, 3
      %s167 = smul.addr %s166, 5
      %s168 = smul.addr %s167, 4
      %s169 = scalar_lea.vmem %s0, %s168
      %s170 = smul.u32 2, %s14
      %s171 = smul.u32 2, %s14
      %p172 = scmp.lt.s32.totalorder %s171, 3
      %s173 = scalar_select %p172, %s171, 3
      %s174 = smul.addr %s173, 4
      %s175 = scalar_lea.vmem %s3, %s174
      %s176 = smul.u32 2, %s14
      %v178 = vld [vmem:[%s169] sm:$0xff]
      %v179 = vld [vmem:[%s169 + $0x8] sm:$0xff]
      %v180 = vld [vmem:[%s169 + $0x10] sm:$0xf]
      %v181 = vld [vmem:[%s169 + $0x14] sm:$0xff]
      %v182 = vld [vmem:[%s169 + $0x1c] sm:$0xff]
      %v183 = vld [vmem:[%s169 + $0x24] sm:$0xf]
      %v184 = vld [vmem:[%s1] sm:$0xff]
      %v185 = vld [vmem:[%s1 + $0x8] sm:$0xff]
      %v186 = vld [vmem:[%s1 + $0x10] sm:$0xff]
      %v187 = vld [vmem:[%s1 + $0x18] sm:$0xff]
      %v188 = vld [vmem:[%s1 + $0x20] sm:$0xff]
      %v189 = vld [vmem:[%s1 + $0x28] sm:$0xff]
      %v190 = vld [vmem:[%s1 + $0x30] sm:$0xff]
      %v191 = vld [vmem:[%s1 + $0x38] sm:$0xff]
      %v192 = vld [vmem:[%s1 + $0x40] sm:$0xff]
      %v193 = vld [vmem:[%s1 + $0x48] sm:$0xff]
      %v194 = vld [vmem:[%s1 + $0x50] sm:$0xff]
      %v195 = vld [vmem:[%s1 + $0x58] sm:$0xff]
      %v196 = vld [vmem:[%s1 + $0x60] sm:$0xff]
      %v197 = vld [vmem:[%s1 + $0x68] sm:$0xff]
      %v198 = vld [vmem:[%s1 + $0x70] sm:$0xff]
      %v199 = vld [vmem:[%s1 + $0x78] sm:$0xff]
      %v200 = vld [vmem:[%s1 + $0x80] sm:$0xff]
      %v201 = vld [vmem:[%s1 + $0x88] sm:$0xff]
      %v202 = vld [vmem:[%s1 + $0x90] sm:$0xff]
      %v203 = vld [vmem:[%s1 + $0x98] sm:$0xff]
      %v204 = vld [vmem:[%s1 + $0xa0] sm:$0xff]
      %v205 = vld [vmem:[%s1 + $0xa8] sm:$0xff]
      %v206 = vld [vmem:[%s1 + $0xb0] sm:$0xff]
      %v207 = vld [vmem:[%s1 + $0xb8] sm:$0xff]
      %v208 = vld [vmem:[%s1 + $0xc0] sm:$0xff]
      %v209 = vld [vmem:[%s1 + $0xc8] sm:$0xff]
      %v210 = vld [vmem:[%s1 + $0xd0] sm:$0xff]
      %v211 = vld [vmem:[%s1 + $0xd8] sm:$0xff]
      %v212 = vld [vmem:[%s1 + $0xe0] sm:$0xff]
      %v213 = vld [vmem:[%s1 + $0xe8] sm:$0xff]
      %v214 = vld [vmem:[%s1 + $0xf0] sm:$0xff]
      %v215 = vld [vmem:[%s1 + $0xf8] sm:$0xff]
      %v216 = vld [vmem:[%s1 + $0x100] sm:$0xff]
      %v217 = vld [vmem:[%s1 + $0x108] sm:$0xff]
      %v218 = vld [vmem:[%s1 + $0x110] sm:$0xff]
      %v219 = vld [vmem:[%s1 + $0x118] sm:$0xff]
      %v220 = vld [vmem:[%s1 + $0x120] sm:$0xff]
      %v221 = vld [vmem:[%s1 + $0x128] sm:$0xff]
      %v222 = vld [vmem:[%s1 + $0x130] sm:$0xff]
      %v223 = vld [vmem:[%s1 + $0x138] sm:$0xff]
      %v224 = vld [vmem:[%s1 + $0x140] sm:$0xff]
      %v225 = vld [vmem:[%s1 + $0x148] sm:$0xff]
      %v226 = vld [vmem:[%s1 + $0x150] sm:$0xff]
      %v227 = vld [vmem:[%s1 + $0x158] sm:$0xff]
      %v228 = vld [vmem:[%s1 + $0x160] sm:$0xff]
      %v229 = vld [vmem:[%s1 + $0x168] sm:$0xff]
      %v230 = vld [vmem:[%s1 + $0x170] sm:$0xff]
      %v231 = vld [vmem:[%s1 + $0x178] sm:$0xff]
      %v232 = vld [vmem:[%s1 + $0x180] sm:$0xff]
      %v233 = vld [vmem:[%s1 + $0x188] sm:$0xff]
      %v234 = vld [vmem:[%s1 + $0x190] sm:$0xff]
      %v235 = vld [vmem:[%s1 + $0x198] sm:$0xff]
      %v236 = vld [vmem:[%s1 + $0x1a0] sm:$0xff]
      %v237 = vld [vmem:[%s1 + $0x1a8] sm:$0xff]
      %v238 = vld [vmem:[%s1 + $0x1b0] sm:$0xff]
      %v239 = vld [vmem:[%s1 + $0x1b8] sm:$0xff]
      %v240 = vld [vmem:[%s1 + $0x1c0] sm:$0xff]
      %v241 = vld [vmem:[%s1 + $0x1c8] sm:$0xff]
      %v242 = vld [vmem:[%s1 + $0x1d0] sm:$0xff]
      %v243 = vld [vmem:[%s1 + $0x1d8] sm:$0xff]
      %v244 = vld [vmem:[%s1 + $0x1e0] sm:$0xff]
      %v245 = vld [vmem:[%s1 + $0x1e8] sm:$0xff]
      %v246 = vld [vmem:[%s1 + $0x1f0] sm:$0xff]
      %v247 = vld [vmem:[%s1 + $0x1f8] sm:$0xff]
      %v248 = vld [vmem:[%s1 + $0x200] sm:$0xff]
      %v249 = vld [vmem:[%s1 + $0x208] sm:$0xff]
      %v250 = vld [vmem:[%s1 + $0x210] sm:$0xff]
      %v251 = vld [vmem:[%s1 + $0x218] sm:$0xff]
      %v252 = vld [vmem:[%s1 + $0x220] sm:$0xff]
      %v253 = vld [vmem:[%s1 + $0x228] sm:$0xff]
      %v254 = vld [vmem:[%s1 + $0x230] sm:$0xff]
      %v255 = vld [vmem:[%s1 + $0x238] sm:$0xff]
      %v256 = vld [vmem:[%s1 + $0x240] sm:$0xff]
      %v257 = vld [vmem:[%s1 + $0x248] sm:$0xff]
      %v258 = vld [vmem:[%s1 + $0x250] sm:$0xff]
      %v259 = vld [vmem:[%s1 + $0x258] sm:$0xff]
      %v260 = vld [vmem:[%s1 + $0x260] sm:$0xff]
      %v261 = vld [vmem:[%s1 + $0x268] sm:$0xff]
      %v262 = vld [vmem:[%s1 + $0x270] sm:$0xff]
      %v263 = vld [vmem:[%s1 + $0x278] sm:$0xff]
      %v264 = vld [vmem:[%s1 + $0x280] sm:$0xff]
      %v265 = vld [vmem:[%s1 + $0x288] sm:$0xff]
      %v266 = vld [vmem:[%s1 + $0x290] sm:$0xff]
      %v267 = vld [vmem:[%s1 + $0x298] sm:$0xff]
      %v268 = vld [vmem:[%s1 + $0x2a0] sm:$0xff]
      %v269 = vld [vmem:[%s1 + $0x2a8] sm:$0xff]
      %v270 = vld [vmem:[%s1 + $0x2b0] sm:$0xff]
      %v271 = vld [vmem:[%s1 + $0x2b8] sm:$0xff]
      %v272 = vld [vmem:[%s1 + $0x2c0] sm:$0xff]
      %v273 = vld [vmem:[%s1 + $0x2c8] sm:$0xff]
      %v274 = vld [vmem:[%s1 + $0x2d0] sm:$0xff]
      %v275 = vld [vmem:[%s1 + $0x2d8] sm:$0xff]
      %v276 = vld [vmem:[%s1 + $0x2e0] sm:$0xff]
      %v277 = vld [vmem:[%s1 + $0x2e8] sm:$0xff]
      %v278 = vld [vmem:[%s1 + $0x2f0] sm:$0xff]
      %v279 = vld [vmem:[%s1 + $0x2f8] sm:$0xff]
      %v280 = vld [vmem:[%s1 + $0x300] sm:$0xff]
      %v281 = vld [vmem:[%s1 + $0x308] sm:$0xff]
      %v282 = vld [vmem:[%s1 + $0x310] sm:$0xff]
      %v283 = vld [vmem:[%s1 + $0x318] sm:$0xff]
      %v284 = vld [vmem:[%s1 + $0x320] sm:$0xff]
      %v285 = vld [vmem:[%s1 + $0x328] sm:$0xff]
      %v286 = vld [vmem:[%s1 + $0x330] sm:$0xff]
      %v287 = vld [vmem:[%s1 + $0x338] sm:$0xff]
      %v288 = vld [vmem:[%s1 + $0x340] sm:$0xff]
      %v289 = vld [vmem:[%s1 + $0x348] sm:$0xff]
      %v290 = vld [vmem:[%s1 + $0x350] sm:$0xff]
      %v291 = vld [vmem:[%s1 + $0x358] sm:$0xff]
      %v292 = vld [vmem:[%s1 + $0x360] sm:$0xff]
      %v293 = vld [vmem:[%s1 + $0x368] sm:$0xff]
      %v294 = vld [vmem:[%s1 + $0x370] sm:$0xff]
      %v295 = vld [vmem:[%s1 + $0x378] sm:$0xff]
      %v296 = vld [vmem:[%s1 + $0x380] sm:$0xff]
      %v297 = vld [vmem:[%s1 + $0x388] sm:$0xff]
      %v298 = vld [vmem:[%s1 + $0x390] sm:$0xff]
      %v299 = vld [vmem:[%s1 + $0x398] sm:$0xff]
      %v300 = vld [vmem:[%s1 + $0x3a0] sm:$0xff]
      %v301 = vld [vmem:[%s1 + $0x3a8] sm:$0xff]
      %v302 = vld [vmem:[%s1 + $0x3b0] sm:$0xff]
      %v303 = vld [vmem:[%s1 + $0x3b8] sm:$0xff]
      %v304 = vld [vmem:[%s1 + $0x3c0] sm:$0xff]
      %v305 = vld [vmem:[%s1 + $0x3c8] sm:$0xff]
      %v306 = vld [vmem:[%s1 + $0x3d0] sm:$0xff]
      %v307 = vld [vmem:[%s1 + $0x3d8] sm:$0xff]
      %v308 = vld [vmem:[%s1 + $0x3e0] sm:$0xff]
      %v309 = vld [vmem:[%s1 + $0x3e8] sm:$0xff]
      %v310 = vld [vmem:[%s1 + $0x3f0] sm:$0xff]
      %v311 = vld [vmem:[%s1 + $0x3f8] sm:$0xff]
      %v312 = vld [vmem:[%s1 + $0x400] sm:$0xff]
      %v313 = vld [vmem:[%s1 + $0x408] sm:$0xff]
      %v314 = vld [vmem:[%s1 + $0x410] sm:$0xff]
      %v315 = vld [vmem:[%s1 + $0x418] sm:$0xff]
      %v316 = vld [vmem:[%s1 + $0x420] sm:$0xff]
      %v317 = vld [vmem:[%s1 + $0x428] sm:$0xff]
      %v318 = vld [vmem:[%s1 + $0x430] sm:$0xff]
      %v319 = vld [vmem:[%s1 + $0x438] sm:$0xff]
      %v320 = vld [vmem:[%s1 + $0x440] sm:$0xff]
      %v321 = vld [vmem:[%s1 + $0x448] sm:$0xff]
      %v322 = vld [vmem:[%s1 + $0x450] sm:$0xff]
      %v323 = vld [vmem:[%s1 + $0x458] sm:$0xff]
      %v324 = vld [vmem:[%s1 + $0x460] sm:$0xff]
      %v325 = vld [vmem:[%s1 + $0x468] sm:$0xff]
      %v326 = vld [vmem:[%s1 + $0x470] sm:$0xff]
      %v327 = vld [vmem:[%s1 + $0x478] sm:$0xff]
      %v334 = vunpack.c.l.b16 %v178
      %v335 = vunpack.c.h.b16 %v178
      %v336 = vunpack.c.l.b16 %v179
      %v337 = vunpack.c.h.b16 %v179
      %v338 = vunpack.c.l.b16 %v180
      %v339 = vunpack.c.l.b16 %v181
      %v340 = vunpack.c.h.b16 %v181
      %v341 = vunpack.c.l.b16 %v182
      %v342 = vunpack.c.h.b16 %v182
      %v343 = vunpack.c.l.b16 %v183
      %v344 = vpack.c.b16 %v339, %v334
      %v345 = vpack.c.b16 %v340, %v335
      %v346 = vpack.c.b16 %v341, %v336
      %v347 = vpack.c.b16 %v342, %v337
      %v348 = vpack.c.b16 %v343, %v338
      %v497 = vunpack.c.l.b16 %v184
      %v498 = vunpack.c.h.b16 %v184
      %v499 = vunpack.c.l.b16 %v185
      %v500 = vunpack.c.h.b16 %v185
      %v501 = vunpack.c.l.b16 %v186
      %v502 = vunpack.c.h.b16 %v186
      %v503 = vunpack.c.l.b16 %v187
      %v504 = vunpack.c.h.b16 %v187
      %v505 = vunpack.c.l.b16 %v188
      %v506 = vunpack.c.h.b16 %v188
      %v507 = vunpack.c.l.b16 %v189
      %v508 = vunpack.c.h.b16 %v189
      %v509 = vunpack.c.l.b16 %v190
      %v510 = vunpack.c.h.b16 %v190
      %v511 = vunpack.c.l.b16 %v191
      %v512 = vunpack.c.h.b16 %v191
      %v513 = vunpack.c.l.b16 %v192
      %v514 = vunpack.c.h.b16 %v192
      %v515 = vunpack.c.l.b16 %v193
      %v516 = vunpack.c.h.b16 %v193
      %v517 = vunpack.c.l.b16 %v194
      %v518 = vunpack.c.h.b16 %v194
      %v519 = vunpack.c.l.b16 %v195
      %v520 = vunpack.c.h.b16 %v195
      %v521 = vunpack.c.l.b16 %v196
      %v522 = vunpack.c.h.b16 %v196
      %v523 = vunpack.c.l.b16 %v197
      %v524 = vunpack.c.h.b16 %v197
      %v525 = vunpack.c.l.b16 %v198
      %v526 = vunpack.c.h.b16 %v198
      %v527 = vunpack.c.l.b16 %v199
      %v528 = vunpack.c.h.b16 %v199
      %v529 = vunpack.c.l.b16 %v200
      %v530 = vunpack.c.h.b16 %v200
      %v531 = vunpack.c.l.b16 %v201
      %v532 = vunpack.c.h.b16 %v201
      %v533 = vunpack.c.l.b16 %v202
      %v534 = vunpack.c.h.b16 %v202
      %v535 = vunpack.c.l.b16 %v203
      %v536 = vunpack.c.h.b16 %v203
      %v537 = vunpack.c.l.b16 %v204
      %v538 = vunpack.c.h.b16 %v204
      %v539 = vunpack.c.l.b16 %v205
      %v540 = vunpack.c.h.b16 %v205
      %v541 = vunpack.c.l.b16 %v206
      %v542 = vunpack.c.h.b16 %v206
      %v543 = vunpack.c.l.b16 %v207
      %v544 = vunpack.c.h.b16 %v207
      %v545 = vunpack.c.l.b16 %v208
      %v546 = vunpack.c.h.b16 %v208
      %v547 = vunpack.c.l.b16 %v209
      %v548 = vunpack.c.h.b16 %v209
      %v549 = vunpack.c.l.b16 %v210
      %v550 = vunpack.c.h.b16 %v210
      %v551 = vunpack.c.l.b16 %v211
      %v552 = vunpack.c.h.b16 %v211
      %v553 = vunpack.c.l.b16 %v212
      %v554 = vunpack.c.h.b16 %v212
      %v555 = vunpack.c.l.b16 %v213
      %v556 = vunpack.c.h.b16 %v213
      %v557 = vunpack.c.l.b16 %v214
      %v558 = vunpack.c.h.b16 %v214
      %v559 = vunpack.c.l.b16 %v215
      %v560 = vunpack.c.h.b16 %v215
      %v561 = vunpack.c.l.b16 %v216
      %v562 = vunpack.c.h.b16 %v216
      %v563 = vunpack.c.l.b16 %v217
      %v564 = vunpack.c.h.b16 %v217
      %v565 = vunpack.c.l.b16 %v218
      %v566 = vunpack.c.h.b16 %v218
      %v567 = vunpack.c.l.b16 %v219
      %v568 = vunpack.c.h.b16 %v219
      %v569 = vunpack.c.l.b16 %v220
      %v570 = vunpack.c.h.b16 %v220
      %v571 = vunpack.c.l.b16 %v221
      %v572 = vunpack.c.h.b16 %v221
      %v573 = vunpack.c.l.b16 %v222
      %v574 = vunpack.c.h.b16 %v222
      %v575 = vunpack.c.l.b16 %v223
      %v576 = vunpack.c.h.b16 %v223
      %v577 = vunpack.c.l.b16 %v224
      %v578 = vunpack.c.h.b16 %v224
      %v579 = vunpack.c.l.b16 %v225
      %v580 = vunpack.c.h.b16 %v225
      %v581 = vunpack.c.l.b16 %v226
      %v582 = vunpack.c.h.b16 %v226
      %v583 = vunpack.c.l.b16 %v227
      %v584 = vunpack.c.h.b16 %v227
      %v585 = vunpack.c.l.b16 %v228
      %v586 = vunpack.c.h.b16 %v228
      %v587 = vunpack.c.l.b16 %v229
      %v588 = vunpack.c.h.b16 %v229
      %v589 = vunpack.c.l.b16 %v230
      %v590 = vunpack.c.h.b16 %v230
      %v591 = vunpack.c.l.b16 %v231
      %v592 = vunpack.c.h.b16 %v231
      %v593 = vunpack.c.l.b16 %v232
      %v594 = vunpack.c.h.b16 %v232
      %v595 = vunpack.c.l.b16 %v233
      %v596 = vunpack.c.h.b16 %v233
      %v597 = vunpack.c.l.b16 %v234
      %v598 = vunpack.c.h.b16 %v234
      %v599 = vunpack.c.l.b16 %v235
      %v600 = vunpack.c.h.b16 %v235
      %v601 = vunpack.c.l.b16 %v236
      %v602 = vunpack.c.h.b16 %v236
      %v603 = vunpack.c.l.b16 %v237
      %v604 = vunpack.c.h.b16 %v237
      %v605 = vunpack.c.l.b16 %v238
      %v606 = vunpack.c.h.b16 %v238
      %v607 = vunpack.c.l.b16 %v239
      %v608 = vunpack.c.h.b16 %v239
      %v609 = vunpack.c.l.b16 %v240
      %v610 = vunpack.c.h.b16 %v240
      %v611 = vunpack.c.l.b16 %v241
      %v612 = vunpack.c.h.b16 %v241
      %v613 = vunpack.c.l.b16 %v242
      %v614 = vunpack.c.h.b16 %v242
      %v615 = vunpack.c.l.b16 %v243
      %v616 = vunpack.c.h.b16 %v243
      %v617 = vunpack.c.l.b16 %v244
      %v618 = vunpack.c.h.b16 %v244
      %v619 = vunpack.c.l.b16 %v245
      %v620 = vunpack.c.h.b16 %v245
      %v621 = vunpack.c.l.b16 %v246
      %v622 = vunpack.c.h.b16 %v246
      %v623 = vunpack.c.l.b16 %v247
      %v624 = vunpack.c.h.b16 %v247
      %v625 = vunpack.c.l.b16 %v248
      %v626 = vunpack.c.h.b16 %v248
      %v627 = vunpack.c.l.b16 %v249
      %v628 = vunpack.c.h.b16 %v249
      %v629 = vunpack.c.l.b16 %v250
      %v630 = vunpack.c.h.b16 %v250
      %v631 = vunpack.c.l.b16 %v251
      %v632 = vunpack.c.h.b16 %v251
      %v633 = vunpack.c.l.b16 %v252
      %v634 = vunpack.c.h.b16 %v252
      %v635 = vunpack.c.l.b16 %v253
      %v636 = vunpack.c.h.b16 %v253
      %v637 = vunpack.c.l.b16 %v254
      %v638 = vunpack.c.h.b16 %v254
      %v639 = vunpack.c.l.b16 %v255
      %v640 = vunpack.c.h.b16 %v255
      %v641 = vunpack.c.l.b16 %v256
      %v642 = vunpack.c.h.b16 %v256
      %v643 = vunpack.c.l.b16 %v257
      %v644 = vunpack.c.h.b16 %v257
      %v645 = vunpack.c.l.b16 %v258
      %v646 = vunpack.c.h.b16 %v258
      %v647 = vunpack.c.l.b16 %v259
      %v648 = vunpack.c.h.b16 %v259
      %v649 = vunpack.c.l.b16 %v260
      %v650 = vunpack.c.h.b16 %v260
      %v651 = vunpack.c.l.b16 %v261
      %v652 = vunpack.c.h.b16 %v261
      %v653 = vunpack.c.l.b16 %v262
      %v654 = vunpack.c.h.b16 %v262
      %v655 = vunpack.c.l.b16 %v263
      %v656 = vunpack.c.h.b16 %v263
      %v657 = vunpack.c.l.b16 %v264
      %v658 = vunpack.c.h.b16 %v264
      %v659 = vunpack.c.l.b16 %v265
      %v660 = vunpack.c.h.b16 %v265
      %v661 = vunpack.c.l.b16 %v266
      %v662 = vunpack.c.h.b16 %v266
      %v663 = vunpack.c.l.b16 %v267
      %v664 = vunpack.c.h.b16 %v267
      %v665 = vunpack.c.l.b16 %v268
      %v666 = vunpack.c.h.b16 %v268
      %v667 = vunpack.c.l.b16 %v269
      %v668 = vunpack.c.h.b16 %v269
      %v669 = vunpack.c.l.b16 %v270
      %v670 = vunpack.c.h.b16 %v270
      %v671 = vunpack.c.l.b16 %v271
      %v672 = vunpack.c.h.b16 %v271
      %v673 = vunpack.c.l.b16 %v272
      %v674 = vunpack.c.h.b16 %v272
      %v675 = vunpack.c.l.b16 %v273
      %v676 = vunpack.c.h.b16 %v273
      %v677 = vunpack.c.l.b16 %v274
      %v678 = vunpack.c.h.b16 %v274
      %v679 = vunpack.c.l.b16 %v275
      %v680 = vunpack.c.h.b16 %v275
      %v681 = vunpack.c.l.b16 %v276
      %v682 = vunpack.c.h.b16 %v276
      %v683 = vunpack.c.l.b16 %v277
      %v684 = vunpack.c.h.b16 %v277
      %v685 = vunpack.c.l.b16 %v278
      %v686 = vunpack.c.h.b16 %v278
      %v687 = vunpack.c.l.b16 %v279
      %v688 = vunpack.c.h.b16 %v279
      %v689 = vunpack.c.l.b16 %v280
      %v690 = vunpack.c.h.b16 %v280
      %v691 = vunpack.c.l.b16 %v281
      %v692 = vunpack.c.h.b16 %v281
      %v693 = vunpack.c.l.b16 %v282
      %v694 = vunpack.c.h.b16 %v282
      %v695 = vunpack.c.l.b16 %v283
      %v696 = vunpack.c.h.b16 %v283
      %v697 = vunpack.c.l.b16 %v284
      %v698 = vunpack.c.h.b16 %v284
      %v699 = vunpack.c.l.b16 %v285
      %v700 = vunpack.c.h.b16 %v285
      %v701 = vunpack.c.l.b16 %v286
      %v702 = vunpack.c.h.b16 %v286
      %v703 = vunpack.c.l.b16 %v287
      %v704 = vunpack.c.h.b16 %v287
      %v705 = vunpack.c.l.b16 %v288
      %v706 = vunpack.c.h.b16 %v288
      %v707 = vunpack.c.l.b16 %v289
      %v708 = vunpack.c.h.b16 %v289
      %v709 = vunpack.c.l.b16 %v290
      %v710 = vunpack.c.h.b16 %v290
      %v711 = vunpack.c.l.b16 %v291
      %v712 = vunpack.c.h.b16 %v291
      %v713 = vunpack.c.l.b16 %v292
      %v714 = vunpack.c.h.b16 %v292
      %v715 = vunpack.c.l.b16 %v293
      %v716 = vunpack.c.h.b16 %v293
      %v717 = vunpack.c.l.b16 %v294
      %v718 = vunpack.c.h.b16 %v294
      %v719 = vunpack.c.l.b16 %v295
      %v720 = vunpack.c.h.b16 %v295
      %v721 = vunpack.c.l.b16 %v296
      %v722 = vunpack.c.h.b16 %v296
      %v723 = vunpack.c.l.b16 %v297
      %v724 = vunpack.c.h.b16 %v297
      %v725 = vunpack.c.l.b16 %v298
      %v726 = vunpack.c.h.b16 %v298
      %v727 = vunpack.c.l.b16 %v299
      %v728 = vunpack.c.h.b16 %v299
      %v729 = vunpack.c.l.b16 %v300
      %v730 = vunpack.c.h.b16 %v300
      %v731 = vunpack.c.l.b16 %v301
      %v732 = vunpack.c.h.b16 %v301
      %v733 = vunpack.c.l.b16 %v302
      %v734 = vunpack.c.h.b16 %v302
      %v735 = vunpack.c.l.b16 %v303
      %v736 = vunpack.c.h.b16 %v303
      %v737 = vunpack.c.l.b16 %v304
      %v738 = vunpack.c.h.b16 %v304
      %v739 = vunpack.c.l.b16 %v305
      %v740 = vunpack.c.h.b16 %v305
      %v741 = vunpack.c.l.b16 %v306
      %v742 = vunpack.c.h.b16 %v306
      %v743 = vunpack.c.l.b16 %v307
      %v744 = vunpack.c.h.b16 %v307
      %v745 = vunpack.c.l.b16 %v308
      %v746 = vunpack.c.h.b16 %v308
      %v747 = vunpack.c.l.b16 %v309
      %v748 = vunpack.c.h.b16 %v309
      %v749 = vunpack.c.l.b16 %v310
      %v750 = vunpack.c.h.b16 %v310
      %v751 = vunpack.c.l.b16 %v311
      %v752 = vunpack.c.h.b16 %v311
      %v753 = vunpack.c.l.b16 %v312
      %v754 = vunpack.c.h.b16 %v312
      %v755 = vunpack.c.l.b16 %v313
      %v756 = vunpack.c.h.b16 %v313
      %v757 = vunpack.c.l.b16 %v314
      %v758 = vunpack.c.h.b16 %v314
      %v759 = vunpack.c.l.b16 %v315
      %v760 = vunpack.c.h.b16 %v315
      %v761 = vunpack.c.l.b16 %v316
      %v762 = vunpack.c.h.b16 %v316
      %v763 = vunpack.c.l.b16 %v317
      %v764 = vunpack.c.h.b16 %v317
      %v765 = vunpack.c.l.b16 %v318
      %v766 = vunpack.c.h.b16 %v318
      %v767 = vunpack.c.l.b16 %v319
      %v768 = vunpack.c.h.b16 %v319
      %v769 = vunpack.c.l.b16 %v320
      %v770 = vunpack.c.h.b16 %v320
      %v771 = vunpack.c.l.b16 %v321
      %v772 = vunpack.c.h.b16 %v321
      %v773 = vunpack.c.l.b16 %v322
      %v774 = vunpack.c.h.b16 %v322
      %v775 = vunpack.c.l.b16 %v323
      %v776 = vunpack.c.h.b16 %v323
      %v777 = vunpack.c.l.b16 %v324
      %v778 = vunpack.c.h.b16 %v324
      %v779 = vunpack.c.l.b16 %v325
      %v780 = vunpack.c.h.b16 %v325
      %v781 = vunpack.c.l.b16 %v326
      %v782 = vunpack.c.h.b16 %v326
      %v783 = vunpack.c.l.b16 %v327
      %v784 = vunpack.c.h.b16 %v327
      %v785 = vpack.c.b16 %v501, %v497
      %v786 = vpack.c.b16 %v502, %v498
      %v787 = vpack.c.b16 %v503, %v499
      %v788 = vpack.c.b16 %v504, %v500
      %v789 = vpack.c.b16 %v509, %v505
      %v790 = vpack.c.b16 %v510, %v506
      %v791 = vpack.c.b16 %v511, %v507
      %v792 = vpack.c.b16 %v512, %v508
      %v793 = vpack.c.b16 %v517, %v513
      %v794 = vpack.c.b16 %v518, %v514
      %v795 = vpack.c.b16 %v519, %v515
      %v796 = vpack.c.b16 %v520, %v516
      %v797 = vpack.c.b16 %v525, %v521
      %v798 = vpack.c.b16 %v526, %v522
      %v799 = vpack.c.b16 %v527, %v523
      %v800 = vpack.c.b16 %v528, %v524
      %v801 = vpack.c.b16 %v533, %v529
      %v802 = vpack.c.b16 %v534, %v530
      %v803 = vpack.c.b16 %v535, %v531
      %v804 = vpack.c.b16 %v536, %v532
      %v805 = vpack.c.b16 %v541, %v537
      %v806 = vpack.c.b16 %v542, %v538
      %v807 = vpack.c.b16 %v543, %v539
      %v808 = vpack.c.b16 %v544, %v540
      %v809 = vpack.c.b16 %v549, %v545
      %v810 = vpack.c.b16 %v550, %v546
      %v811 = vpack.c.b16 %v551, %v547
      %v812 = vpack.c.b16 %v552, %v548
      %v813 = vpack.c.b16 %v557, %v553
      %v814 = vpack.c.b16 %v558, %v554
      %v815 = vpack.c.b16 %v559, %v555
      %v816 = vpack.c.b16 %v560, %v556
      %v817 = vpack.c.b16 %v565, %v561
      %v818 = vpack.c.b16 %v566, %v562
      %v819 = vpack.c.b16 %v567, %v563
      %v820 = vpack.c.b16 %v568, %v564
      %v821 = vpack.c.b16 %v573, %v569
      %v822 = vpack.c.b16 %v574, %v570
      %v823 = vpack.c.b16 %v575, %v571
      %v824 = vpack.c.b16 %v576, %v572
      %v825 = vpack.c.b16 %v581, %v577
      %v826 = vpack.c.b16 %v582, %v578
      %v827 = vpack.c.b16 %v583, %v579
      %v828 = vpack.c.b16 %v584, %v580
      %v829 = vpack.c.b16 %v589, %v585
      %v830 = vpack.c.b16 %v590, %v586
      %v831 = vpack.c.b16 %v591, %v587
      %v832 = vpack.c.b16 %v592, %v588
      %v833 = vpack.c.b16 %v597, %v593
      %v834 = vpack.c.b16 %v598, %v594
      %v835 = vpack.c.b16 %v599, %v595
      %v836 = vpack.c.b16 %v600, %v596
      %v837 = vpack.c.b16 %v605, %v601
      %v838 = vpack.c.b16 %v606, %v602
      %v839 = vpack.c.b16 %v607, %v603
      %v840 = vpack.c.b16 %v608, %v604
      %v841 = vpack.c.b16 %v613, %v609
      %v842 = vpack.c.b16 %v614, %v610
      %v843 = vpack.c.b16 %v615, %v611
      %v844 = vpack.c.b16 %v616, %v612
      %v845 = vpack.c.b16 %v621, %v617
      %v846 = vpack.c.b16 %v622, %v618
      %v847 = vpack.c.b16 %v623, %v619
      %v848 = vpack.c.b16 %v624, %v620
      %v849 = vpack.c.b16 %v629, %v625
      %v850 = vpack.c.b16 %v630, %v626
      %v851 = vpack.c.b16 %v631, %v627
      %v852 = vpack.c.b16 %v632, %v628
      %v853 = vpack.c.b16 %v637, %v633
      %v854 = vpack.c.b16 %v638, %v634
      %v855 = vpack.c.b16 %v639, %v635
      %v856 = vpack.c.b16 %v640, %v636
      %v857 = vpack.c.b16 %v645, %v641
      %v858 = vpack.c.b16 %v646, %v642
      %v859 = vpack.c.b16 %v647, %v643
      %v860 = vpack.c.b16 %v648, %v644
      %v861 = vpack.c.b16 %v653, %v649
      %v862 = vpack.c.b16 %v654, %v650
      %v863 = vpack.c.b16 %v655, %v651
      %v864 = vpack.c.b16 %v656, %v652
      %v865 = vpack.c.b16 %v661, %v657
      %v866 = vpack.c.b16 %v662, %v658
      %v867 = vpack.c.b16 %v663, %v659
      %v868 = vpack.c.b16 %v664, %v660
      %v869 = vpack.c.b16 %v669, %v665
      %v870 = vpack.c.b16 %v670, %v666
      %v871 = vpack.c.b16 %v671, %v667
      %v872 = vpack.c.b16 %v672, %v668
      %v873 = vpack.c.b16 %v677, %v673
      %v874 = vpack.c.b16 %v678, %v674
      %v875 = vpack.c.b16 %v679, %v675
      %v876 = vpack.c.b16 %v680, %v676
      %v877 = vpack.c.b16 %v685, %v681
      %v878 = vpack.c.b16 %v686, %v682
      %v879 = vpack.c.b16 %v687, %v683
      %v880 = vpack.c.b16 %v688, %v684
      %v881 = vpack.c.b16 %v693, %v689
      %v882 = vpack.c.b16 %v694, %v690
      %v883 = vpack.c.b16 %v695, %v691
      %v884 = vpack.c.b16 %v696, %v692
      %v885 = vpack.c.b16 %v701, %v697
      %v886 = vpack.c.b16 %v702, %v698
      %v887 = vpack.c.b16 %v703, %v699
      %v888 = vpack.c.b16 %v704, %v700
      %v889 = vpack.c.b16 %v709, %v705
      %v890 = vpack.c.b16 %v710, %v706
      %v891 = vpack.c.b16 %v711, %v707
      %v892 = vpack.c.b16 %v712, %v708
      %v893 = vpack.c.b16 %v717, %v713
      %v894 = vpack.c.b16 %v718, %v714
      %v895 = vpack.c.b16 %v719, %v715
      %v896 = vpack.c.b16 %v720, %v716
      %v897 = vpack.c.b16 %v725, %v721
      %v898 = vpack.c.b16 %v726, %v722
      %v899 = vpack.c.b16 %v727, %v723
      %v900 = vpack.c.b16 %v728, %v724
      %v901 = vpack.c.b16 %v733, %v729
      %v902 = vpack.c.b16 %v734, %v730
      %v903 = vpack.c.b16 %v735, %v731
      %v904 = vpack.c.b16 %v736, %v732
      %v905 = vpack.c.b16 %v741, %v737
      %v906 = vpack.c.b16 %v742, %v738
      %v907 = vpack.c.b16 %v743, %v739
      %v908 = vpack.c.b16 %v744, %v740
      %v909 = vpack.c.b16 %v749, %v745
      %v910 = vpack.c.b16 %v750, %v746
      %v911 = vpack.c.b16 %v751, %v747
      %v912 = vpack.c.b16 %v752, %v748
      %v913 = vpack.c.b16 %v757, %v753
      %v914 = vpack.c.b16 %v758, %v754
      %v915 = vpack.c.b16 %v759, %v755
      %v916 = vpack.c.b16 %v760, %v756
      %v917 = vpack.c.b16 %v765, %v761
      %v918 = vpack.c.b16 %v766, %v762
      %v919 = vpack.c.b16 %v767, %v763
      %v920 = vpack.c.b16 %v768, %v764
      %v921 = vpack.c.b16 %v773, %v769
      %v922 = vpack.c.b16 %v774, %v770
      %v923 = vpack.c.b16 %v775, %v771
      %v924 = vpack.c.b16 %v776, %v772
      %v925 = vpack.c.b16 %v781, %v777
      %v926 = vpack.c.b16 %v782, %v778
      %v927 = vpack.c.b16 %v783, %v779
      %v928 = vpack.c.b16 %v784, %v780
      %vm1073 = vcmask 523264
      %v1075 = vsel %vm1073, %v348, 0
      %1077 = vmatprep.subr.bf16.mxu0 %v814
      %1078 = vmatpush1.bf16.msra.mxu0 %v813
      %1079 = vmatprep.subr.bf16.mxu0 %v810
      %1080 = vmatpush1.bf16.msra.mxu0 %v809
      %1081 = vmatprep.subr.bf16.mxu0 %v806
      %1082 = vmatpush1.bf16.msra.mxu0 %v805
      %1083 = vmatprep.subr.bf16.mxu0 %v802
      %1084 = vmatpush1.bf16.msra.mxu0 %v801
      %1085 = vmatprep.subr.bf16.mxu0 %v798
      %1086 = vmatpush1.bf16.msra.mxu0 %v797
      %1087 = vmatprep.subr.bf16.mxu0 %v794
      %1088 = vmatpush1.bf16.msra.mxu0 %v793
      %1089 = vmatprep.subr.bf16.mxu0 %v790
      %1090 = vmatpush1.bf16.msra.mxu0 %v789
      %1091 = vmatprep.subr.bf16.mxu0 %v786
      %1092 = vmatpush1.bf16.msra.mxu0 %v785
      %1093 = vmatprep.subr.bf16.mxu0 %v846
      %1094 = vmatpush2.bf16.msra.mxu0 %v845
      %1095 = vmatprep.subr.bf16.mxu0 %v842
      %1096 = vmatpush2.bf16.msra.mxu0 %v841
      %1097 = vmatprep.subr.bf16.mxu0 %v838
      %1098 = vmatpush2.bf16.msra.mxu0 %v837
      %1099 = vmatprep.subr.bf16.mxu0 %v834
      %1100 = vmatpush2.bf16.msra.mxu0 %v833
      %1101 = vmatprep.subr.bf16.mxu0 %v830
      %1102 = vmatpush2.bf16.msra.mxu0 %v829
      %1103 = vmatprep.subr.bf16.mxu0 %v826
      %1104 = vmatpush2.bf16.msra.mxu0 %v825
      %1105 = vmatprep.subr.bf16.mxu0 %v822
      %1106 = vmatpush2.bf16.msra.mxu0 %v821
      %1107 = vmatprep.subr.bf16.mxu0 %v818
      %1108 = vmatpush2.bf16.msra.mxu0 %v817
      %1109 = vmatprep.mubr.bf16.mxu0 %v345
      %1110 = vmatmul.mubr.bf16.gmra.mxu0 %v344
      %v1111 = vpop.f32.mrf.mxu0
      %v1112 = vadd.f32 0.0, %v1111
      %v1113 = vpop.f32.mrf.mxu0
      %v1114 = vadd.f32 0.0, %v1113
      %v1115 = vpop.f32.mrf.mxu0
      %v1116 = vadd.f32 0.0, %v1115
      %v1117 = vpop.f32.mrf.mxu0
      %v1118 = vadd.f32 0.0, %v1117
      %1119 = vdwg.mxu0
      %1120 = vmatprep.subr.bf16.mxu0 %v878
      %1121 = vmatpush1.bf16.msra.mxu0 %v877
      %1122 = vmatprep.subr.bf16.mxu0 %v874
      %1123 = vmatpush1.bf16.msra.mxu0 %v873
      %1124 = vmatprep.subr.bf16.mxu0 %v870
      %1125 = vmatpush1.bf16.msra.mxu0 %v869
      %1126 = vmatprep.subr.bf16.mxu0 %v866
      %1127 = vmatpush1.bf16.msra.mxu0 %v865
      %1128 = vmatprep.subr.bf16.mxu0 %v862
      %1129 = vmatpush1.bf16.msra.mxu0 %v861
      %1130 = vmatprep.subr.bf16.mxu0 %v858
      %1131 = vmatpush1.bf16.msra.mxu0 %v857
      %1132 = vmatprep.subr.bf16.mxu0 %v854
      %1133 = vmatpush1.bf16.msra.mxu0 %v853
      %1134 = vmatprep.subr.bf16.mxu0 %v850
      %1135 = vmatpush1.bf16.msra.mxu0 %v849
      %1136 = vmatprep.subr.bf16.mxu0 %v910
      %1137 = vmatpush2.bf16.msra.mxu0 %v909
      %1138 = vmatprep.subr.bf16.mxu0 %v906
      %1139 = vmatpush2.bf16.msra.mxu0 %v905
      %1140 = vmatprep.subr.bf16.mxu0 %v902
      %1141 = vmatpush2.bf16.msra.mxu0 %v901
      %1142 = vmatprep.subr.bf16.mxu0 %v898
      %1143 = vmatpush2.bf16.msra.mxu0 %v897
      %1144 = vmatprep.subr.bf16.mxu0 %v894
      %1145 = vmatpush2.bf16.msra.mxu0 %v893
      %1146 = vmatprep.subr.bf16.mxu0 %v890
      %1147 = vmatpush2.bf16.msra.mxu0 %v889
      %1148 = vmatprep.subr.bf16.mxu0 %v886
      %1149 = vmatpush2.bf16.msra.mxu0 %v885
      %1150 = vmatprep.subr.bf16.mxu0 %v882
      %1151 = vmatpush2.bf16.msra.mxu0 %v881
      %1152 = vmatprep.mubr.bf16.mxu0 %v347
      %1153 = vmatmul.mubr.bf16.gmra.mxu0 %v346
      %v1154 = vpop.f32.mrf.mxu0
      %v1155 = vadd.f32 %v1112, %v1154
      %v1156 = vpop.f32.mrf.mxu0
      %v1157 = vadd.f32 %v1114, %v1156
      %v1158 = vpop.f32.mrf.mxu0
      %v1159 = vadd.f32 %v1116, %v1158
      %v1160 = vpop.f32.mrf.mxu0
      %v1161 = vadd.f32 %v1118, %v1160
      %1162 = vdwg.mxu0
      %1163 = vmatprep.subr.bf16.mxu0 0
      %1164 = vmatpush1.bf16.msra.mxu0 0
      %1165 = vmatprep.subr.bf16.mxu0 0
      %1166 = vmatpush1.bf16.msra.mxu0 0
      %1167 = vmatprep.subr.bf16.mxu0 0
      %1168 = vmatpush1.bf16.msra.mxu0 0
      %1169 = vmatprep.subr.bf16.mxu0 0
      %1170 = vmatpush1.bf16.msra.mxu0 0
      %1171 = vmatprep.subr.bf16.mxu0 %v926
      %1172 = vmatpush1.bf16.msra.mxu0 %v925
      %1173 = vmatprep.subr.bf16.mxu0 %v922
      %1174 = vmatpush1.bf16.msra.mxu0 %v921
      %1175 = vmatprep.subr.bf16.mxu0 %v918
      %1176 = vmatpush1.bf16.msra.mxu0 %v917
      %1177 = vmatprep.subr.bf16.mxu0 %v914
      %1178 = vmatpush1.bf16.msra.mxu0 %v913
      %1179 = vmatprep.subr.bf16.mxu0 0
      %1180 = vmatpush2.bf16.msra.mxu0 0
      %1181 = vmatprep.subr.bf16.mxu0 0
      %1182 = vmatpush2.bf16.msra.mxu0 0
      %1183 = vmatprep.subr.bf16.mxu0 0
      %1184 = vmatpush2.bf16.msra.mxu0 0
      %1185 = vmatprep.subr.bf16.mxu0 0
      %1186 = vmatpush2.bf16.msra.mxu0 0
      %1187 = vmatprep.subr.bf16.mxu0 0
      %1188 = vmatpush2.bf16.msra.mxu0 0
      %1189 = vmatprep.subr.bf16.mxu0 0
      %1190 = vmatpush2.bf16.msra.mxu0 0
      %1191 = vmatprep.subr.bf16.mxu0 0
      %1192 = vmatpush2.bf16.msra.mxu0 0
      %1193 = vmatprep.subr.bf16.mxu0 0
      %1194 = vmatpush2.bf16.msra.mxu0 0
      %1195 = vmatprep.mubr.bf16.mxu0 0
      %1196 = vmatmul.mubr.bf16.gmra.mxu0 %v1075
      %v1197 = vpop.f32.mrf.mxu0
      %v1198 = vadd.f32 %v1155, %v1197
      %v1199 = vpop.f32.mrf.mxu0
      %v1200 = vadd.f32 %v1157, %v1199
      %v1201 = vpop.f32.mrf.mxu0
      %v1202 = vadd.f32 %v1159, %v1201
      %v1203 = vpop.f32.mrf.mxu0
      %v1204 = vadd.f32 %v1161, %v1203
      %1205 = vdwg.mxu0
      %1206 = vmatprep.subr.bf16.mxu0 %v816
      %1207 = vmatpush1.bf16.msra.mxu0 %v815
      %1208 = vmatprep.subr.bf16.mxu0 %v812
      %1209 = vmatpush1.bf16.msra.mxu0 %v811
      %1210 = vmatprep.subr.bf16.mxu0 %v808
      %1211 = vmatpush1.bf16.msra.mxu0 %v807
      %1212 = vmatprep.subr.bf16.mxu0 %v804
      %1213 = vmatpush1.bf16.msra.mxu0 %v803
      %1214 = vmatprep.subr.bf16.mxu0 %v800
      %1215 = vmatpush1.bf16.msra.mxu0 %v799
      %1216 = vmatprep.subr.bf16.mxu0 %v796
      %1217 = vmatpush1.bf16.msra.mxu0 %v795
      %1218 = vmatprep.subr.bf16.mxu0 %v792
      %1219 = vmatpush1.bf16.msra.mxu0 %v791
      %1220 = vmatprep.subr.bf16.mxu0 %v788
      %1221 = vmatpush1.bf16.msra.mxu0 %v787
      %1222 = vmatprep.subr.bf16.mxu0 %v848
      %1223 = vmatpush2.bf16.msra.mxu0 %v847
      %1224 = vmatprep.subr.bf16.mxu0 %v844
      %1225 = vmatpush2.bf16.msra.mxu0 %v843
      %1226 = vmatprep.subr.bf16.mxu0 %v840
      %1227 = vmatpush2.bf16.msra.mxu0 %v839
      %1228 = vmatprep.subr.bf16.mxu0 %v836
      %1229 = vmatpush2.bf16.msra.mxu0 %v835
      %1230 = vmatprep.subr.bf16.mxu0 %v832
      %1231 = vmatpush2.bf16.msra.mxu0 %v831
      %1232 = vmatprep.subr.bf16.mxu0 %v828
      %1233 = vmatpush2.bf16.msra.mxu0 %v827
      %1234 = vmatprep.subr.bf16.mxu0 %v824
      %1235 = vmatpush2.bf16.msra.mxu0 %v823
      %1236 = vmatprep.subr.bf16.mxu0 %v820
      %1237 = vmatpush2.bf16.msra.mxu0 %v819
      %1238 = vmatprep.mubr.bf16.mxu0 %v345
      %1239 = vmatmul.mubr.bf16.gmra.mxu0 %v344
      %v1240 = vpop.f32.mrf.mxu0
      %v1241 = vadd.f32 0.0, %v1240
      %v1242 = vpop.f32.mrf.mxu0
      %v1243 = vadd.f32 0.0, %v1242
      %v1244 = vpop.f32.mrf.mxu0
      %v1245 = vadd.f32 0.0, %v1244
      %v1246 = vpop.f32.mrf.mxu0
      %v1247 = vadd.f32 0.0, %v1246
      %1248 = vdwg.mxu0
      %1249 = vmatprep.subr.bf16.mxu0 %v880
      %1250 = vmatpush1.bf16.msra.mxu0 %v879
      %1251 = vmatprep.subr.bf16.mxu0 %v876
      %1252 = vmatpush1.bf16.msra.mxu0 %v875
      %1253 = vmatprep.subr.bf16.mxu0 %v872
      %1254 = vmatpush1.bf16.msra.mxu0 %v871
      %1255 = vmatprep.subr.bf16.mxu0 %v868
      %1256 = vmatpush1.bf16.msra.mxu0 %v867
      %1257 = vmatprep.subr.bf16.mxu0 %v864
      %1258 = vmatpush1.bf16.msra.mxu0 %v863
      %1259 = vmatprep.subr.bf16.mxu0 %v860
      %1260 = vmatpush1.bf16.msra.mxu0 %v859
      %1261 = vmatprep.subr.bf16.mxu0 %v856
      %1262 = vmatpush1.bf16.msra.mxu0 %v855
      %1263 = vmatprep.subr.bf16.mxu0 %v852
      %1264 = vmatpush1.bf16.msra.mxu0 %v851
      %1265 = vmatprep.subr.bf16.mxu0 %v912
      %1266 = vmatpush2.bf16.msra.mxu0 %v911
      %1267 = vmatprep.subr.bf16.mxu0 %v908
      %1268 = vmatpush2.bf16.msra.mxu0 %v907
      %1269 = vmatprep.subr.bf16.mxu0 %v904
      %1270 = vmatpush2.bf16.msra.mxu0 %v903
      %1271 = vmatprep.subr.bf16.mxu0 %v900
      %1272 = vmatpush2.bf16.msra.mxu0 %v899
      %1273 = vmatprep.subr.bf16.mxu0 %v896
      %1274 = vmatpush2.bf16.msra.mxu0 %v895
      %1275 = vmatprep.subr.bf16.mxu0 %v892
      %1276 = vmatpush2.bf16.msra.mxu0 %v891
      %1277 = vmatprep.subr.bf16.mxu0 %v888
      %1278 = vmatpush2.bf16.msra.mxu0 %v887
      %1279 = vmatprep.subr.bf16.mxu0 %v884
      %1280 = vmatpush2.bf16.msra.mxu0 %v883
      %1281 = vmatprep.mubr.bf16.mxu0 %v347
      %1282 = vmatmul.mubr.bf16.gmra.mxu0 %v346
      %v1283 = vpop.f32.mrf.mxu0
      %v1284 = vadd.f32 %v1241, %v1283
      %v1285 = vpop.f32.mrf.mxu0
      %v1286 = vadd.f32 %v1243, %v1285
      %v1287 = vpop.f32.mrf.mxu0
      %v1288 = vadd.f32 %v1245, %v1287
      %v1289 = vpop.f32.mrf.mxu0
      %v1290 = vadd.f32 %v1247, %v1289
      %1291 = vdwg.mxu0
      %1292 = vmatprep.subr.bf16.mxu0 0
      %1293 = vmatpush1.bf16.msra.mxu0 0
      %1294 = vmatprep.subr.bf16.mxu0 0
      %1295 = vmatpush1.bf16.msra.mxu0 0
      %1296 = vmatprep.subr.bf16.mxu0 0
      %1297 = vmatpush1.bf16.msra.mxu0 0
      %1298 = vmatprep.subr.bf16.mxu0 0
      %1299 = vmatpush1.bf16.msra.mxu0 0
      %1300 = vmatprep.subr.bf16.mxu0 %v928
      %1301 = vmatpush1.bf16.msra.mxu0 %v927
      %1302 = vmatprep.subr.bf16.mxu0 %v924
      %1303 = vmatpush1.bf16.msra.mxu0 %v923
      %1304 = vmatprep.subr.bf16.mxu0 %v920
      %1305 = vmatpush1.bf16.msra.mxu0 %v919
      %1306 = vmatprep.subr.bf16.mxu0 %v916
      %1307 = vmatpush1.bf16.msra.mxu0 %v915
      %1308 = vmatprep.subr.bf16.mxu0 0
      %1309 = vmatpush2.bf16.msra.mxu0 0
      %1310 = vmatprep.subr.bf16.mxu0 0
      %1311 = vmatpush2.bf16.msra.mxu0 0
      %1312 = vmatprep.subr.bf16.mxu0 0
      %1313 = vmatpush2.bf16.msra.mxu0 0
      %1314 = vmatprep.subr.bf16.mxu0 0
      %1315 = vmatpush2.bf16.msra.mxu0 0
      %1316 = vmatprep.subr.bf16.mxu0 0
      %1317 = vmatpush2.bf16.msra.mxu0 0
      %1318 = vmatprep.subr.bf16.mxu0 0
      %1319 = vmatpush2.bf16.msra.mxu0 0
      %1320 = vmatprep.subr.bf16.mxu0 0
      %1321 = vmatpush2.bf16.msra.mxu0 0
      %1322 = vmatprep.subr.bf16.mxu0 0
      %1323 = vmatpush2.bf16.msra.mxu0 0
      %1324 = vmatprep.mubr.bf16.mxu0 0
      %1325 = vmatmul.mubr.bf16.gmra.mxu0 %v1075
      %v1326 = vpop.f32.mrf.mxu0
      %v1327 = vadd.f32 %v1284, %v1326
      %v1328 = vpop.f32.mrf.mxu0
      %v1329 = vadd.f32 %v1286, %v1328
      %v1330 = vpop.f32.mrf.mxu0
      %v1331 = vadd.f32 %v1288, %v1330
      %v1332 = vpop.f32.mrf.mxu0
      %v1333 = vadd.f32 %v1290, %v1332
      %1334 = vdwg.mxu0
      %v1335 = vmax.f32 %v1198, %v1200
      %v1336 = vmax.f32 %v1202, %v1204
      %v1337 = vmax.f32 %v1327, %v1329
      %v1338 = vmax.f32 %v1331, %v1333
      %v1339 = vmax.f32 %v1335, %v1337
      %v1340 = vmax.f32 %v1336, %v1338
      %v1341 = vld [vmem:[%s2] sm:$0x1]
      %v1343 = vlaneseq
      %v1344 = vshrl.u32 %v1343, 7
      %v1345 = vsub.s32 0, %v1344
      %v1346 = vrot.slane %v1341, %v1345
      %v1348 = vadd.f32 %v1339, %v1346
      %v1349 = vadd.f32 %v1340, %v1346
      %v1350 = vmax.f32 %v1348, 0.0
      %v1351 = vmax.f32 %v1349, 0.0
      %v1352 = vpack.c.bf16 %v1351, %v1350
      %v1354 = vunpack.c.l.b16 %v1352
      %v1355 = vunpack.c.h.b16 %v1352
      %v1356 = vpack.c.b16 %v1354, %v1354
      %v1357 = vpack.c.b16 %v1355, %v1355
      %vm1360 = vcmask 683008
      %1361 = vst.msk [vmem:[%s175] sm:$0xf] %vm1360, %v1356
      %1362 = vst.msk [vmem:[%s175 + $0x4] sm:$0xf] %vm1360, %v1357
      %s1363 = smul.u32 2, %s14
      %p1364 = scmp.lt.s32.totalorder %s1363, 3
      %s1365 = scalar_select %p1364, %s1363, 3
      %s1366 = smul.addr %s1365, 4
      %s1367 = scalar_lea.vmem %s3, %s1366
      // Predicated region
      $region33: #{net_forward.3} parent=31 // pred_check
        %p1368 = pneg %p100
      $region34: #{net_forward.3} parent=31 // pred_check_branch
        %1370 = sbr.rel (%p1368) target = $region36
      $region35: #{net_forward.3} parent=31 // pred_region
        %s1371 = smul.u32 2, %s14
      $region36: #{net_forward.3} parent=31 // pred_fallthru
        _
    $region32: #{net_forward.3} parent=5 // pred_fallthru
      _
    %p1372 = scmp.le.s32.totalorder 2, %s9
    // Predicated region
    $region37: #{net_forward.3} parent=5 // pred_check
      %p1373 = pneg %p1372
    $region38: #{net_forward.3} parent=5 // pred_check_branch
      %1375 = sbr.rel (%p1373) target = $region40
    $region39: #{net_forward.3} parent=5 // pred_region
      %s1376 = ssub.s32 %s9, 2
      // Predicated region
      $region41: #{net_forward.3} parent=39 // pred_check
        %p1377 = pneg %p106
      $region42: #{net_forward.3} parent=39 // pred_check_branch
        %1379 = sbr.rel (%p1377) target = $region44
      $region43: #{net_forward.3} parent=39 // pred_region
        %s1380 = smul.u32 2, %s15
        %p1381 = scmp.lt.s32.totalorder %s1380, 3
        %s1382 = scalar_select %p1381, %s1380, 3
        %s1383 = smul.addr %s1382, 4
        %s1384 = scalar_lea.vmem %s3, %s1383
      $region44: #{net_forward.3} parent=39 // pred_fallthru
        _
    $region40: #{net_forward.3} parent=5 // pred_fallthru
      _
  $region6: #{net_forward.3} parent=0 // loop_footer
    %s13 = sadd.s32 1, %s9
  $region7: #{net_forward.3} parent=0 // loop_footer_branch
    %8 = sbr.rel target = $region3
  $region8: #{net_forward.3} parent=0 // loop_exit
    _

// kernel: net_forward.5
$region0: #{net_forward.5}
  #allocation0 [shape = 'u32[]', space=smem, size = 0x4, offset = 0x4, fixed_abs, tag = 'smem constant byte address 0x4 - core index']
  #allocation1 [shape = 'u32[144,128]{1,0:T(1,128)}', space=vmem, size = 0x12000, scoped, tag = 'internal scratch']
  %s0 = inlined_call_operand.vmem [shape: bf16[8,400], index: 0, kind: input, shape index: {}]
  %s1 = inlined_call_operand.vmem [shape: bf16[400,32], index: 1, kind: input, shape index: {}]
  %s2 = inlined_call_operand.vmem [shape: f32[1,32], index: 2, kind: input, shape index: {}]
  %s3 = inlined_call_operand.vmem [shape: bf16[32,120], index: 3, kind: input, shape index: {}]
  %s4 = inlined_call_operand.vmem [shape: f32[1,120], index: 4, kind: input, shape index: {}]
  %s5 = inlined_call_operand.vmem [shape: bf16[120,84], index: 5, kind: input, shape index: {}]
  %s6 = inlined_call_operand.vmem [shape: f32[1,84], index: 6, kind: input, shape index: {}]
  %s7 = inlined_call_operand.vmem [shape: bf16[84,10], index: 7, kind: input, shape index: {}]
  %s8 = inlined_call_operand.vmem [shape: f32[1,10], index: 8, kind: input, shape index: {}]
  %s9 = inlined_call_operand.vmem [shape: f32[8,10], index: 9, kind: output, shape index: {}]
  %s10 = sld [smem:[#allocation0]]
  $region46: #{net_forward.5} parent=0
    _
  %s12 = ssub.s32 1, %s10
  %s13 = scalar_select 0, %s12, %s10
  // Predicated region
  $region2: #{net_forward.5} parent=0 // pred_check
    _
  $region3: #{net_forward.5} parent=0 // pred_check_branch
    %15 = sbr.rel (0) target = $region5
  $region4: #{net_forward.5} parent=0 // pred_region
    _
  $region5: #{net_forward.5} parent=0 // pred_fallthru
    _
  // Predicated region
  $region6: #{net_forward.5} parent=0 // pred_check
    _
  $region7: #{net_forward.5} parent=0 // pred_check_branch
    %17 = sbr.rel (0) target = $region9
  $region8: #{net_forward.5} parent=0 // pred_region
    _
  $region9: #{net_forward.5} parent=0 // pred_fallthru
    _
  // Predicated region
  $region10: #{net_forward.5} parent=0 // pred_check
    _
  $region11: #{net_forward.5} parent=0 // pred_check_branch
    %19 = sbr.rel (0) target = $region13
  $region12: #{net_forward.5} parent=0 // pred_region
    _
  $region13: #{net_forward.5} parent=0 // pred_fallthru
    _
  // Predicated region
  $region14: #{net_forward.5} parent=0 // pred_check
    _
  $region15: #{net_forward.5} parent=0 // pred_check_branch
    %21 = sbr.rel (0) target = $region17
  $region16: #{net_forward.5} parent=0 // pred_region
    _
  $region17: #{net_forward.5} parent=0 // pred_fallthru
    _
  // Predicated region
  $region18: #{net_forward.5} parent=0 // pred_check
    _
  $region19: #{net_forward.5} parent=0 // pred_check_branch
    %23 = sbr.rel (0) target = $region21
  $region20: #{net_forward.5} parent=0 // pred_region
    _
  $region21: #{net_forward.5} parent=0 // pred_fallthru
    _
  // Predicated region
  $region22: #{net_forward.5} parent=0 // pred_check
    _
  $region23: #{net_forward.5} parent=0 // pred_check_branch
    %25 = sbr.rel (0) target = $region25
  $region24: #{net_forward.5} parent=0 // pred_region
    _
  $region25: #{net_forward.5} parent=0 // pred_fallthru
    _
  // Predicated region
  $region26: #{net_forward.5} parent=0 // pred_check
    _
  $region27: #{net_forward.5} parent=0 // pred_check_branch
    %27 = sbr.rel (0) target = $region29
  $region28: #{net_forward.5} parent=0 // pred_region
    _
  $region29: #{net_forward.5} parent=0 // pred_fallthru
    _
  // Predicated region
  $region30: #{net_forward.5} parent=0 // pred_check
    _
  $region31: #{net_forward.5} parent=0 // pred_check_branch
    %29 = sbr.rel (0) target = $region33
  $region32: #{net_forward.5} parent=0 // pred_region
    _
  $region33: #{net_forward.5} parent=0 // pred_fallthru
    _
  // Predicated region
  $region34: #{net_forward.5} parent=0 // pred_check
    _
  $region35: #{net_forward.5} parent=0 // pred_check_branch
    %31 = sbr.rel (0) target = $region37
  $region36: #{net_forward.5} parent=0 // pred_region
    _
  $region37: #{net_forward.5} parent=0 // pred_fallthru
    _
  %v33 = vld [vmem:[%s0] sm:$0xff]
  %v34 = vld [vmem:[%s0 + $0x8] sm:$0xff]
  %v35 = vld [vmem:[%s1] sm:$0xf]
  %v36 = vld [vmem:[%s1 + $0x4] sm:$0xf]
  %v37 = vld [vmem:[%s1 + $0x8] sm:$0xf]
  %v38 = vld [vmem:[%s1 + $0xc] sm:$0xf]
  %v39 = vld [vmem:[%s1 + $0x10] sm:$0xf]
  %v40 = vld [vmem:[%s1 + $0x14] sm:$0xf]
  %v41 = vld [vmem:[%s1 + $0x18] sm:$0xf]
  %v42 = vld [vmem:[%s1 + $0x1c] sm:$0xf]
  %v43 = vld [vmem:[%s1 + $0x20] sm:$0xf]
  %v44 = vld [vmem:[%s1 + $0x24] sm:$0xf]
  %v45 = vld [vmem:[%s1 + $0x28] sm:$0xf]
  %v46 = vld [vmem:[%s1 + $0x2c] sm:$0xf]
  %v47 = vld [vmem:[%s1 + $0x30] sm:$0xf]
  %v48 = vld [vmem:[%s1 + $0x34] sm:$0xf]
  %v49 = vld [vmem:[%s1 + $0x38] sm:$0xf]
  %v50 = vld [vmem:[%s1 + $0x3c] sm:$0xf]
  %v51 = vld [vmem:[%s1 + $0x40] sm:$0xf]
  %v52 = vld [vmem:[%s1 + $0x44] sm:$0xf]
  %v53 = vld [vmem:[%s1 + $0x48] sm:$0xf]
  %v54 = vld [vmem:[%s1 + $0x4c] sm:$0xf]
  %v55 = vld [vmem:[%s1 + $0x50] sm:$0xf]
  %v56 = vld [vmem:[%s1 + $0x54] sm:$0xf]
  %v57 = vld [vmem:[%s1 + $0x58] sm:$0xf]
  %v58 = vld [vmem:[%s1 + $0x5c] sm:$0xf]
  %v59 = vld [vmem:[%s1 + $0x60] sm:$0xf]
  %v60 = vld [vmem:[%s1 + $0x64] sm:$0xf]
  %v61 = vld [vmem:[%s1 + $0x68] sm:$0xf]
  %v62 = vld [vmem:[%s1 + $0x6c] sm:$0xf]
  %v63 = vld [vmem:[%s1 + $0x70] sm:$0xf]
  %v64 = vld [vmem:[%s1 + $0x74] sm:$0xf]
  %v65 = vld [vmem:[%s1 + $0x78] sm:$0xf]
  %v66 = vld [vmem:[%s1 + $0x7c] sm:$0xf]
  %v67 = vld [vmem:[%s1 + $0x80] sm:$0xf]
  %v68 = vld [vmem:[%s1 + $0x84] sm:$0xf]
  %v69 = vld [vmem:[%s1 + $0x88] sm:$0xf]
  %v70 = vld [vmem:[%s1 + $0x8c] sm:$0xf]
  %v71 = vld [vmem:[%s1 + $0x90] sm:$0xf]
  %v72 = vld [vmem:[%s1 + $0x94] sm:$0xf]
  %v73 = vld [vmem:[%s1 + $0x98] sm:$0xf]
  %v74 = vld [vmem:[%s1 + $0x9c] sm:$0xf]
  %v75 = vld [vmem:[%s1 + $0xa0] sm:$0xf]
  %v76 = vld [vmem:[%s1 + $0xa4] sm:$0xf]
  %v77 = vld [vmem:[%s1 + $0xa8] sm:$0xf]
  %v78 = vld [vmem:[%s1 + $0xac] sm:$0xf]
  %v79 = vld [vmem:[%s1 + $0xb0] sm:$0xf]
  %v80 = vld [vmem:[%s1 + $0xb4] sm:$0xf]
  %v81 = vld [vmem:[%s1 + $0xb8] sm:$0xf]
  %v82 = vld [vmem:[%s1 + $0xbc] sm:$0xf]
  %v83 = vld [vmem:[%s1 + $0xc0] sm:$0xf]
  %v84 = vld [vmem:[%s1 + $0xc4] sm:$0xf]
  %v85 = vld [vmem:[%s2] sm:$0x1]
  %v87 = vlaneseq
  %v88 = vshrl.u32 %v87, 7
  %v89 = vsub.s32 0, %v88
  %v90 = vrot.slane %v85, %v89
  %v94 = vunpack.c.l.b16 %v33
  %v95 = vunpack.c.h.b16 %v33
  %v96 = vunpack.c.l.b16 %v34
  %v97 = vunpack.c.h.b16 %v34
  %v98 = vpack.c.b16 %v94, %v94
  %v99 = vpack.c.b16 %v95, %v95
  %v100 = vpack.c.b16 %v96, %v96
  %v101 = vpack.c.b16 %v97, %v97
  %v155 = vunpack.c.l.b16 %v35
  %v156 = vunpack.c.l.b16 %v36
  %v157 = vunpack.c.l.b16 %v37
  %v158 = vunpack.c.l.b16 %v38
  %v159 = vunpack.c.l.b16 %v39
  %v160 = vunpack.c.l.b16 %v40
  %v161 = vunpack.c.l.b16 %v41
  %v162 = vunpack.c.l.b16 %v42
  %v163 = vunpack.c.l.b16 %v43
  %v164 = vunpack.c.l.b16 %v44
  %v165 = vunpack.c.l.b16 %v45
  %v166 = vunpack.c.l.b16 %v46
  %v167 = vunpack.c.l.b16 %v47
  %v168 = vunpack.c.l.b16 %v48
  %v169 = vunpack.c.l.b16 %v49
  %v170 = vunpack.c.l.b16 %v50
  %v171 = vunpack.c.l.b16 %v51
  %v172 = vunpack.c.l.b16 %v52
  %v173 = vunpack.c.l.b16 %v53
  %v174 = vunpack.c.l.b16 %v54
  %v175 = vunpack.c.l.b16 %v55
  %v176 = vunpack.c.l.b16 %v56
  %v177 = vunpack.c.l.b16 %v57
  %v178 = vunpack.c.l.b16 %v58
  %v179 = vunpack.c.l.b16 %v59
  %v180 = vunpack.c.l.b16 %v60
  %v181 = vunpack.c.l.b16 %v61
  %v182 = vunpack.c.l.b16 %v62
  %v183 = vunpack.c.l.b16 %v63
  %v184 = vunpack.c.l.b16 %v64
  %v185 = vunpack.c.l.b16 %v65
  %v186 = vunpack.c.l.b16 %v66
  %v187 = vunpack.c.l.b16 %v67
  %v188 = vunpack.c.l.b16 %v68
  %v189 = vunpack.c.l.b16 %v69
  %v190 = vunpack.c.l.b16 %v70
  %v191 = vunpack.c.l.b16 %v71
  %v192 = vunpack.c.l.b16 %v72
  %v193 = vunpack.c.l.b16 %v73
  %v194 = vunpack.c.l.b16 %v74
  %v195 = vunpack.c.l.b16 %v75
  %v196 = vunpack.c.l.b16 %v76
  %v197 = vunpack.c.l.b16 %v77
  %v198 = vunpack.c.l.b16 %v78
  %v199 = vunpack.c.l.b16 %v79
  %v200 = vunpack.c.l.b16 %v80
  %v201 = vunpack.c.l.b16 %v81
  %v202 = vunpack.c.l.b16 %v82
  %v203 = vunpack.c.l.b16 %v83
  %v204 = vunpack.c.l.b16 %v84
  %v205 = vpack.c.b16 %v156, %v155
  %v206 = vpack.c.b16 %v158, %v157
  %v207 = vpack.c.b16 %v160, %v159
  %v208 = vpack.c.b16 %v162, %v161
  %v209 = vpack.c.b16 %v164, %v163
  %v210 = vpack.c.b16 %v166, %v165
  %v211 = vpack.c.b16 %v168, %v167
  %v212 = vpack.c.b16 %v170, %v169
  %v213 = vpack.c.b16 %v172, %v171
  %v214 = vpack.c.b16 %v174, %v173
  %v215 = vpack.c.b16 %v176, %v175
  %v216 = vpack.c.b16 %v178, %v177
  %v217 = vpack.c.b16 %v180, %v179
  %v218 = vpack.c.b16 %v182, %v181
  %v219 = vpack.c.b16 %v184, %v183
  %v220 = vpack.c.b16 %v186, %v185
  %v221 = vpack.c.b16 %v188, %v187
  %v222 = vpack.c.b16 %v190, %v189
  %v223 = vpack.c.b16 %v192, %v191
  %v224 = vpack.c.b16 %v194, %v193
  %v225 = vpack.c.b16 %v196, %v195
  %v226 = vpack.c.b16 %v198, %v197
  %v227 = vpack.c.b16 %v200, %v199
  %v228 = vpack.c.b16 %v202, %v201
  %v229 = vpack.c.b16 %v204, %v203
  %vm255 = vcmask 130048
  %v257 = vsel %vm255, %v101, 0
  %259 = vmatprep.subr.bf16.mxu0 0
  %260 = vmatpush1.bf16.msra.mxu0 %v212
  %261 = vmatprep.subr.bf16.mxu0 0
  %262 = vmatpush1.bf16.msra.mxu0 %v211
  %263 = vmatprep.subr.bf16.mxu0 0
  %264 = vmatpush1.bf16.msra.mxu0 %v210
  %265 = vmatprep.subr.bf16.mxu0 0
  %266 = vmatpush1.bf16.msra.mxu0 %v209
  %267 = vmatprep.subr.bf16.mxu0 0
  %268 = vmatpush1.bf16.msra.mxu0 %v208
  %269 = vmatprep.subr.bf16.mxu0 0
  %270 = vmatpush1.bf16.msra.mxu0 %v207
  %271 = vmatprep.subr.bf16.mxu0 0
  %272 = vmatpush1.bf16.msra.mxu0 %v206
  %273 = vmatprep.subr.bf16.mxu0 0
  %274 = vmatpush1.bf16.msra.mxu0 %v205
  %275 = vmatprep.subr.bf16.mxu0 0
  %276 = vmatpush2.bf16.msra.mxu0 %v220
  %277 = vmatprep.subr.bf16.mxu0 0
  %278 = vmatpush2.bf16.msra.mxu0 %v219
  %279 = vmatprep.subr.bf16.mxu0 0
  %280 = vmatpush2.bf16.msra.mxu0 %v218
  %281 = vmatprep.subr.bf16.mxu0 0
  %282 = vmatpush2.bf16.msra.mxu0 %v217
  %283 = vmatprep.subr.bf16.mxu0 0
  %284 = vmatpush2.bf16.msra.mxu0 %v216
  %285 = vmatprep.subr.bf16.mxu0 0
  %286 = vmatpush2.bf16.msra.mxu0 %v215
  %287 = vmatprep.subr.bf16.mxu0 0
  %288 = vmatpush2.bf16.msra.mxu0 %v214
  %289 = vmatprep.subr.bf16.mxu0 0
  %290 = vmatpush2.bf16.msra.mxu0 %v213
  %291 = vmatprep.mubr.bf16.mxu0 %v99
  %292 = vmatmul.mubr.bf16.gmra.mxu0 %v98
  %v293 = vpop.f32.mrf.mxu0
  %v294 = vadd.f32 %v90, %v293
  %v295 = vpop.f32.mrf.mxu0
  %v296 = vpop.f32.mrf.mxu0
  %v297 = vpop.f32.mrf.mxu0
  %298 = vdwg.mxu0
  %299 = vmatprep.subr.bf16.mxu0 0
  %300 = vmatpush1.bf16.msra.mxu0 %v228
  %301 = vmatprep.subr.bf16.mxu0 0
  %302 = vmatpush1.bf16.msra.mxu0 %v227
  %303 = vmatprep.subr.bf16.mxu0 0
  %304 = vmatpush1.bf16.msra.mxu0 %v226
  %305 = vmatprep.subr.bf16.mxu0 0
  %306 = vmatpush1.bf16.msra.mxu0 %v225
  %307 = vmatprep.subr.bf16.mxu0 0
  %308 = vmatpush1.bf16.msra.mxu0 %v224
  %309 = vmatprep.subr.bf16.mxu0 0
  %310 = vmatpush1.bf16.msra.mxu0 %v223
  %311 = vmatprep.subr.bf16.mxu0 0
  %312 = vmatpush1.bf16.msra.mxu0 %v222
  %313 = vmatprep.subr.bf16.mxu0 0
  %314 = vmatpush1.bf16.msra.mxu0 %v221
  %315 = vmatprep.subr.bf16.mxu0 0
  %316 = vmatpush2.bf16.msra.mxu0 0
  %317 = vmatprep.subr.bf16.mxu0 0
  %318 = vmatpush2.bf16.msra.mxu0 0
  %319 = vmatprep.subr.bf16.mxu0 0
  %320 = vmatpush2.bf16.msra.mxu0 0
  %321 = vmatprep.subr.bf16.mxu0 0
  %322 = vmatpush2.bf16.msra.mxu0 0
  %323 = vmatprep.subr.bf16.mxu0 0
  %324 = vmatpush2.bf16.msra.mxu0 0
  %325 = vmatprep.subr.bf16.mxu0 0
  %326 = vmatpush2.bf16.msra.mxu0 0
  %327 = vmatprep.subr.bf16.mxu0 0
  %328 = vmatpush2.bf16.msra.mxu0 0
  %329 = vmatprep.subr.bf16.mxu0 0
  %330 = vmatpush2.bf16.msra.mxu0 %v229
  %331 = vmatprep.mubr.bf16.mxu0 %v257
  %332 = vmatmul.mubr.bf16.gmra.mxu0 %v100
  %v333 = vpop.f32.mrf.mxu0
  %v334 = vadd.f32 %v294, %v333
  %v335 = vpop.f32.mrf.mxu0
  %v336 = vpop.f32.mrf.mxu0
  %v337 = vpop.f32.mrf.mxu0
  %338 = vdwg.mxu0
  %v339 = vmax.f32 %v334, 0.0
  %v340 = vpack.c.bf16 %v339, %v339
  %v341 = vld [vmem:[%s3] sm:$0xf]
  %v342 = vld [vmem:[%s3 + $0x4] sm:$0xf]
  %v343 = vld [vmem:[%s3 + $0x8] sm:$0xf]
  %v344 = vld [vmem:[%s3 + $0xc] sm:$0xf]
  %v345 = vld [vmem:[%s4] sm:$0x1]
  %v347 = vlaneseq
  %v348 = vshrl.u32 %v347, 7
  %v349 = vsub.s32 0, %v348
  %v350 = vrot.slane %v345, %v349
  %v356 = vunpack.c.l.b16 %v341
  %v357 = vunpack.c.l.b16 %v342
  %v358 = vunpack.c.l.b16 %v343
  %v359 = vunpack.c.l.b16 %v344
  %v360 = vpack.c.b16 %v357, %v356
  %v361 = vpack.c.b16 %v359, %v358
  %vm364 = vcmask 261120
  %v366 = vsel %vm364, %v340, 0
  %368 = vmatprep.subr.bf16.mxu0 0
  %369 = vmatpush1.bf16.msra.mxu0 0
  %370 = vmatprep.subr.bf16.mxu0 0
  %371 = vmatpush1.bf16.msra.mxu0 0
  %372 = vmatprep.subr.bf16.mxu0 0
  %373 = vmatpush1.bf16.msra.mxu0 0
  %374 = vmatprep.subr.bf16.mxu0 0
  %375 = vmatpush1.bf16.msra.mxu0 0
  %376 = vmatprep.subr.bf16.mxu0 0
  %377 = vmatpush1.bf16.msra.mxu0 0
  %378 = vmatprep.subr.bf16.mxu0 0
  %379 = vmatpush1.bf16.msra.mxu0 0
  %380 = vmatprep.subr.bf16.mxu0 0
  %381 = vmatpush1.bf16.msra.mxu0 %v361
  %382 = vmatprep.subr.bf16.mxu0 0
  %383 = vmatpush1.bf16.msra.mxu0 %v360
  %384 = vmatprep.subr.bf16.mxu0 0
  %385 = vmatpush2.bf16.msra.mxu0 0
  %386 = vmatprep.subr.bf16.mxu0 0
  %387 = vmatpush2.bf16.msra.mxu0 0
  %388 = vmatprep.subr.bf16.mxu0 0
  %389 = vmatpush2.bf16.msra.mxu0 0
  %390 = vmatprep.subr.bf16.mxu0 0
  %391 = vmatpush2.bf16.msra.mxu0 0
  %392 = vmatprep.subr.bf16.mxu0 0
  %393 = vmatpush2.bf16.msra.mxu0 0
  %394 = vmatprep.subr.bf16.mxu0 0
  %395 = vmatpush2.bf16.msra.mxu0 0
  %396 = vmatprep.subr.bf16.mxu0 0
  %397 = vmatpush2.bf16.msra.mxu0 0
  %398 = vmatprep.subr.bf16.mxu0 0
  %399 = vmatpush2.bf16.msra.mxu0 0
  %400 = vmatprep.mubr.bf16.mxu0 0
  %401 = vmatmul.mubr.bf16.gmra.mxu0 %v366
  %v402 = vpop.f32.mrf.mxu0
  %v403 = vadd.f32 %v350, %v402
  %v404 = vpop.f32.mrf.mxu0
  %v405 = vpop.f32.mrf.mxu0
  %v406 = vpop.f32.mrf.mxu0
  %407 = vdwg.mxu0
  %v408 = vmax.f32 %v403, 0.0
  %v409 = vpack.c.bf16 %v408, %v408
  %v410 = vld [vmem:[%s5] sm:$0xf]
  %v411 = vld [vmem:[%s5 + $0x4] sm:$0xf]
  %v412 = vld [vmem:[%s5 + $0x8] sm:$0xf]
  %v413 = vld [vmem:[%s5 + $0xc] sm:$0xf]
  %v414 = vld [vmem:[%s5 + $0x10] sm:$0xf]
  %v415 = vld [vmem:[%s5 + $0x14] sm:$0xf]
  %v416 = vld [vmem:[%s5 + $0x18] sm:$0xf]
  %v417 = vld [vmem:[%s5 + $0x1c] sm:$0xf]
  %v418 = vld [vmem:[%s5 + $0x20] sm:$0xf]
  %v419 = vld [vmem:[%s5 + $0x24] sm:$0xf]
  %v420 = vld [vmem:[%s5 + $0x28] sm:$0xf]
  %v421 = vld [vmem:[%s5 + $0x2c] sm:$0xf]
  %v422 = vld [vmem:[%s5 + $0x30] sm:$0xf]
  %v423 = vld [vmem:[%s5 + $0x34] sm:$0xf]
  %v424 = vld [vmem:[%s5 + $0x38] sm:$0xf]
  %v425 = vld [vmem:[%s6] sm:$0x1]
  %v427 = vlaneseq
  %v428 = vshrl.u32 %v427, 7
  %v429 = vsub.s32 0, %v428
  %v430 = vrot.slane %v425, %v429
  %v447 = vunpack.c.l.b16 %v410
  %v448 = vunpack.c.l.b16 %v411
  %v449 = vunpack.c.l.b16 %v412
  %v450 = vunpack.c.l.b16 %v413
  %v451 = vunpack.c.l.b16 %v414
  %v452 = vunpack.c.l.b16 %v415
  %v453 = vunpack.c.l.b16 %v416
  %v454 = vunpack.c.l.b16 %v417
  %v455 = vunpack.c.l.b16 %v418
  %v456 = vunpack.c.l.b16 %v419
  %v457 = vunpack.c.l.b16 %v420
  %v458 = vunpack.c.l.b16 %v421
  %v459 = vunpack.c.l.b16 %v422
  %v460 = vunpack.c.l.b16 %v423
  %v461 = vunpack.c.l.b16 %v424
  %v462 = vpack.c.b16 %v448, %v447
  %v463 = vpack.c.b16 %v450, %v449
  %v464 = vpack.c.b16 %v452, %v451
  %v465 = vpack.c.b16 %v454, %v453
  %v466 = vpack.c.b16 %v456, %v455
  %v467 = vpack.c.b16 %v458, %v457
  %v468 = vpack.c.b16 %v460, %v459
  %v469 = vpack.c.b16 %v461, %v461
  %vm477 = vcmask 982016
  %v479 = vsel %vm477, %v409, 0
  %vm481 = vcmask 1043456
  %v483 = vsel %vm481, %v469, 0
  %485 = vmatprep.subr.bf16.mxu0 0
  %486 = vmatpush1.bf16.msra.mxu0 %v483
  %487 = vmatprep.subr.bf16.mxu0 0
  %488 = vmatpush1.bf16.msra.mxu0 %v468
  %489 = vmatprep.subr.bf16.mxu0 0
  %490 = vmatpush1.bf16.msra.mxu0 %v467
  %491 = vmatprep.subr.bf16.mxu0 0
  %492 = vmatpush1.bf16.msra.mxu0 %v466
  %493 = vmatprep.subr.bf16.mxu0 0
  %494 = vmatpush1.bf16.msra.mxu0 %v465
  %495 = vmatprep.subr.bf16.mxu0 0
  %496 = vmatpush1.bf16.msra.mxu0 %v464
  %497 = vmatprep.subr.bf16.mxu0 0
  %498 = vmatpush1.bf16.msra.mxu0 %v463
  %499 = vmatprep.subr.bf16.mxu0 0
  %500 = vmatpush1.bf16.msra.mxu0 %v462
  %501 = vmatprep.subr.bf16.mxu0 0
  %502 = vmatpush2.bf16.msra.mxu0 0
  %503 = vmatprep.subr.bf16.mxu0 0
  %504 = vmatpush2.bf16.msra.mxu0 0
  %505 = vmatprep.subr.bf16.mxu0 0
  %506 = vmatpush2.bf16.msra.mxu0 0
  %507 = vmatprep.subr.bf16.mxu0 0
  %508 = vmatpush2.bf16.msra.mxu0 0
  %509 = vmatprep.subr.bf16.mxu0 0
  %510 = vmatpush2.bf16.msra.mxu0 0
  %511 = vmatprep.subr.bf16.mxu0 0
  %512 = vmatpush2.bf16.msra.mxu0 0
  %513 = vmatprep.subr.bf16.mxu0 0
  %514 = vmatpush2.bf16.msra.mxu0 0
  %515 = vmatprep.subr.bf16.mxu0 0
  %516 = vmatpush2.bf16.msra.mxu0 0
  %517 = vmatprep.mubr.bf16.mxu0 0
  %518 = vmatmul.mubr.bf16.gmra.mxu0 %v479
  %v519 = vpop.f32.mrf.mxu0
  %v520 = vadd.f32 %v430, %v519
  %v521 = vpop.f32.mrf.mxu0
  %v522 = vpop.f32.mrf.mxu0
  %v523 = vpop.f32.mrf.mxu0
  %524 = vdwg.mxu0
  %v525 = vmax.f32 %v520, 0.0
  %v526 = vpack.c.bf16 %v525, %v525
  %v527 = vld [vmem:[%s7] sm:$0xf]
  %v528 = vld [vmem:[%s7 + $0x4] sm:$0xf]
  %v529 = vld [vmem:[%s7 + $0x8] sm:$0xf]
  %v530 = vld [vmem:[%s7 + $0xc] sm:$0xf]
  %v531 = vld [vmem:[%s7 + $0x10] sm:$0xf]
  %v532 = vld [vmem:[%s7 + $0x14] sm:$0xf]
  %v533 = vld [vmem:[%s7 + $0x18] sm:$0xf]
  %v534 = vld [vmem:[%s7 + $0x1c] sm:$0xf]
  %v535 = vld [vmem:[%s7 + $0x20] sm:$0xf]
  %v536 = vld [vmem:[%s7 + $0x24] sm:$0xf]
  %v537 = vld [vmem:[%s7 + $0x28] sm:$0x3]
  %v538 = vld [vmem:[%s8] sm:$0x1]
  %v540 = vlaneseq
  %v541 = vshrl.u32 %v540, 7
  %v542 = vsub.s32 0, %v541
  %v543 = vrot.slane %v538, %v542
  %v556 = vunpack.c.l.b16 %v527
  %v557 = vunpack.c.l.b16 %v528
  %v558 = vunpack.c.l.b16 %v529
  %v559 = vunpack.c.l.b16 %v530
  %v560 = vunpack.c.l.b16 %v531
  %v561 = vunpack.c.l.b16 %v532
  %v562 = vunpack.c.l.b16 %v533
  %v563 = vunpack.c.l.b16 %v534
  %v564 = vunpack.c.l.b16 %v535
  %v565 = vunpack.c.l.b16 %v536
  %v566 = vunpack.c.l.b16 %v537
  %v567 = vpack.c.b16 %v557, %v556
  %v568 = vpack.c.b16 %v559, %v558
  %v569 = vpack.c.b16 %v561, %v560
  %v570 = vpack.c.b16 %v563, %v562
  %v571 = vpack.c.b16 %v565, %v564
  %v572 = vpack.c.b16 %v566, %v566
  %vm578 = vcmask 687104
  %v580 = vsel %vm578, %v526, 0
  %vm582 = vcmask 1041408
  %v584 = vsel %vm582, %v572, 0
  %586 = vmatprep.subr.bf16.mxu0 0
  %587 = vmatpush1.bf16.msra.mxu0 0
  %588 = vmatprep.subr.bf16.mxu0 0
  %589 = vmatpush1.bf16.msra.mxu0 0
  %590 = vmatprep.subr.bf16.mxu0 0
  %591 = vmatpush1.bf16.msra.mxu0 %v584
  %592 = vmatprep.subr.bf16.mxu0 0
  %593 = vmatpush1.bf16.msra.mxu0 %v571
  %594 = vmatprep.subr.bf16.mxu0 0
  %595 = vmatpush1.bf16.msra.mxu0 %v570
  %596 = vmatprep.subr.bf16.mxu0 0
  %597 = vmatpush1.bf16.msra.mxu0 %v569
  %598 = vmatprep.subr.bf16.mxu0 0
  %599 = vmatpush1.bf16.msra.mxu0 %v568
  %600 = vmatprep.subr.bf16.mxu0 0
  %601 = vmatpush1.bf16.msra.mxu0 %v567
  %602 = vmatprep.subr.bf16.mxu0 0
  %603 = vmatpush2.bf16.msra.mxu0 0
  %604 = vmatprep.subr.bf16.mxu0 0
  %605 = vmatpush2.bf16.msra.mxu0 0
  %606 = vmatprep.subr.bf16.mxu0 0
  %607 = vmatpush2.bf16.msra.mxu0 0
  %608 = vmatprep.subr.bf16.mxu0 0
  %609 = vmatpush2.bf16.msra.mxu0 0
  %610 = vmatprep.subr.bf16.mxu0 0
  %611 = vmatpush2.bf16.msra.mxu0 0
  %612 = vmatprep.subr.bf16.mxu0 0
  %613 = vmatpush2.bf16.msra.mxu0 0
  %614 = vmatprep.subr.bf16.mxu0 0
  %615 = vmatpush2.bf16.msra.mxu0 0
  %616 = vmatprep.subr.bf16.mxu0 0
  %617 = vmatpush2.bf16.msra.mxu0 0
  %618 = vmatprep.mubr.bf16.mxu0 0
  %619 = vmatmul.mubr.bf16.gmra.mxu0 %v580
  %v620 = vpop.f32.mrf.mxu0
  %v621 = vadd.f32 %v543, %v620
  %v622 = vpop.f32.mrf.mxu0
  %v623 = vpop.f32.mrf.mxu0
  %v624 = vpop.f32.mrf.mxu0
  %625 = vdwg.mxu0
  %vm626 = vcmask 80896
  %627 = vst.msk [vmem:[%s9] sm:$0xff] %vm626, %v621
  // Predicated region
  $region38: #{net_forward.5} parent=0 // pred_check
    _
  $region39: #{net_forward.5} parent=0 // pred_check_branch
    %629 = sbr.rel (0) target = $region41
  $region40: #{net_forward.5} parent=0 // pred_region
    _
  $region41: #{net_forward.5} parent=0 // pred_fallthru
    _
  // Predicated region
  $region42: #{net_forward.5} parent=0 // pred_check
    _
  $region43: #{net_forward.5} parent=0 // pred_check_branch
    %631 = sbr.rel (0) target = $region45
  $region44: #{net_forward.5} parent=0 // pred_region
    _
  $region45: #{net_forward.5} parent=0 // pred_fallthru
    _

// kernel: net_forward.4
$region0: #{net_forward.4}
  #allocation0 [shape = 'u32[]', space=smem, size = 0x4, offset = 0x4, fixed_abs, tag = 'smem constant byte address 0x4 - core index']
  #allocation1 [shape = 'u32[144,128]{1,0:T(1,128)}', space=vmem, size = 0x12000, scoped, tag = 'internal scratch']
  %s0 = inlined_call_operand.vmem [shape: bf16[16,504], index: 0, kind: input, shape index: {}]
  %s1 = inlined_call_operand.vmem [shape: bf16[504,512], index: 1, kind: input, shape index: {}]
  %s2 = inlined_call_operand.vmem [shape: f32[1,128], index: 2, kind: input, shape index: {}]
  %s3 = inlined_call_operand.vmem [shape: bf16[16,80], index: 3, kind: output, shape index: {}]
  %s4 = sld [smem:[#allocation0]]
  $region45: #{net_forward.4} parent=0
    _
  %s6 = ssub.s32 1, %s4
  %s7 = scalar_select 0, %s6, %s4
  loop: start=0, step=1, limit=4
  $region2: #{net_forward.4} parent=0 // loop_pre_header
    _
  $region3: #{net_forward.4} parent=0 // loop_header
    %s9 = sphi 0, %s13
    %p10 = scmp.ge.s32.totalorder %s9, 4
    %s19 = sphi 0, %s21
    %s22 = sphi 0, %s19
    %s23 = sphi 0, %s22
    %s39 = sphi 0, %s23
    %s43 = sphi 0, %s43
    %s45 = sphi 0, %s43
    %s46 = sphi 0, %s45
    %s60 = sphi 0, %s46
    %s64 = sphi 0, %s64
    %s66 = sphi 0, %s64
    %s67 = sphi 0, %s66
    %s81 = sphi 0, %s67
    %s87 = sphi 0, %s89
    %s90 = sphi 0, %s87
    %s91 = sphi 0, %s90
    %s107 = sphi 0, %s91
  $region4: #{net_forward.4} parent=0 // loop_header_branch
    %12 = sbr.rel (%p10) target = $region8
  $region5: #{net_forward.4} parent=0 // loop_body
    %s14 = ssub.s32 %s9, 1
    %s15 = ssub.s32 %s9, 2
    %s16 = sadd.s32 %s9, 1
    %s17 = ssub.s32 %s9, %s16
    %p18 = scmp.eq.s32.totalorder %s17, 0
    %s20 = sadd.s32 %s19, 1
    %s21 = scalar_select %p18, %s19, %s20
    %p24 = pneg %p18
    %p25 = scmp.eq.s32.totalorder %s9, 1
    %p26 = por %p24, %p25
    %p27 = scmp.ne.s32.totalorder %s19, %s22
    %p28 = scmp.eq.s32.totalorder %s9, 0
    %p29 = por %p27, %p28
    %p30 = scmp.ne.s32.totalorder %s19, %s22
    %p31 = scmp.eq.s32.totalorder %s14, 1
    %p32 = por %p30, %p31
    %p33 = scmp.ne.s32.totalorder %s22, %s23
    %p34 = scmp.eq.s32.totalorder %s14, 0
    %p35 = por %p33, %p34
    %p36 = scmp.ne.s32.totalorder %s22, %s23
    %p37 = scmp.eq.s32.totalorder %s15, 1
    %p38 = por %p36, %p37
    %p40 = scmp.ne.s32.totalorder %s23, %s39
    %p41 = scmp.eq.s32.totalorder %s15, 0
    %p42 = por %p40, %p41
    %s44 = sadd.s32 %s43, 1
    %p47 = scmp.eq.s32.totalorder %s9, 1
    %p48 = scmp.ne.s32.totalorder %s43, %s45
    %p49 = scmp.eq.s32.totalorder %s9, 0
    %p50 = por %p48, %p49
    %p51 = scmp.ne.s32.totalorder %s43, %s45
    %p52 = scmp.eq.s32.totalorder %s14, 1
    %p53 = por %p51, %p52
    %p54 = scmp.ne.s32.totalorder %s45, %s46
    %p55 = scmp.eq.s32.totalorder %s14, 0
    %p56 = por %p54, %p55
    %p57 = scmp.ne.s32.totalorder %s45, %s46
    %p58 = scmp.eq.s32.totalorder %s15, 1
    %p59 = por %p57, %p58
    %p61 = scmp.ne.s32.totalorder %s46, %s60
    %p62 = scmp.eq.s32.totalorder %s15, 0
    %p63 = por %p61, %p62
    %s65 = sadd.s32 %s64, 1
    %p68 = scmp.eq.s32.totalorder %s9, 1
    %p69 = scmp.ne.s32.totalorder %s64, %s66
    %p70 = scmp.eq.s32.totalorder %s9, 0
    %p71 = por %p69, %p70
    %p72 = scmp.ne.s32.totalorder %s64, %s66
    %p73 = scmp.eq.s32.totalorder %s14, 1
    %p74 = por %p72, %p73
    %p75 = scmp.ne.s32.totalorder %s66, %s67
    %p76 = scmp.eq.s32.totalorder %s14, 0
    %p77 = por %p75, %p76
    %p78 = scmp.ne.s32.totalorder %s66, %s67
    %p79 = scmp.eq.s32.totalorder %s15, 1
    %p80 = por %p78, %p79
    %p82 = scmp.ne.s32.totalorder %s67, %s81
    %p83 = scmp.eq.s32.totalorder %s15, 0
    %p84 = por %p82, %p83
    %s85 = ssub.s32 %s9, %s16
    %p86 = scmp.eq.s32.totalorder %s85, 0
    %s88 = sadd.s32 %s87, 1
    %s89 = scalar_select %p86, %s87, %s88
    %p92 = pneg %p86
    %p93 = scmp.eq.s32.totalorder %s9, 1
    %p94 = por %p92, %p93
    %p95 = scmp.ne.s32.totalorder %s87, %s90
    %p96 = scmp.eq.s32.totalorder %s9, 0
    %p97 = por %p95, %p96
    %p98 = scmp.ne.s32.totalorder %s87, %s90
    %p99 = scmp.eq.s32.totalorder %s14, 1
    %p100 = por %p98, %p99
    %p101 = scmp.ne.s32.totalorder %s90, %s91
    %p102 = scmp.eq.s32.totalorder %s14, 0
    %p103 = por %p101, %p102
    %p104 = scmp.ne.s32.totalorder %s90, %s91
    %p105 = scmp.eq.s32.totalorder %s15, 1
    %p106 = por %p104, %p105
    %p108 = scmp.ne.s32.totalorder %s91, %s107
    %p109 = scmp.eq.s32.totalorder %s15, 0
    %p110 = por %p108, %p109
    %p111 = scmp.le.s32.totalorder 1, %s9
    %p112 = scmp.lt.s32.totalorder %s9, 3
    %p113 = pnand %p111, %p112
    %p114 = pneg %p113
    // Predicated region
    $region9: #{net_forward.4} parent=5 // pred_check
      _
    $region10: #{net_forward.4} parent=5 // pred_check_branch
      %116 = sbr.rel (%p113) target = $region12
    $region11: #{net_forward.4} parent=5 // pred_region
      %s117 = ssub.s32 %s9, 1
      // Predicated region
      $region13: #{net_forward.4} parent=11 // pred_check
        %p118 = pneg %p56
      $region14: #{net_forward.4} parent=11 // pred_check_branch
        %120 = sbr.rel (%p118) target = $region16
      $region15: #{net_forward.4} parent=11 // pred_region
        _
      $region16: #{net_forward.4} parent=11 // pred_fallthru
        _
      // Predicated region
      $region17: #{net_forward.4} parent=11 // pred_check
        %p121 = pneg %p77
      $region18: #{net_forward.4} parent=11 // pred_check_branch
        %123 = sbr.rel (%p121) target = $region20
      $region19: #{net_forward.4} parent=11 // pred_region
        _
      $region20: #{net_forward.4} parent=11 // pred_fallthru
        _
    $region12: #{net_forward.4} parent=5 // pred_fallthru
      _
    %p124 = scmp.lt.s32.totalorder %s9, 2
    // Predicated region
    $region21: #{net_forward.4} parent=5 // pred_check
      %p125 = pneg %p124
    $region22: #{net_forward.4} parent=5 // pred_check_branch
      %127 = sbr.rel (%p125) target = $region24
    $region23: #{net_forward.4} parent=5 // pred_region
      // Predicated region
      $region25: #{net_forward.4} parent=23 // pred_check
        %p128 = pneg %p29
      $region26: #{net_forward.4} parent=23 // pred_check_branch
        %130 = sbr.rel (%p128) target = $region28
      $region27: #{net_forward.4} parent=23 // pred_region
        %p131 = scmp.lt.s32.totalorder %s9, 1
        %s132 = scalar_select %p131, %s9, 1
        %s133 = smul.addr %s132, 4
        %s134 = smul.addr %s133, 4
        %s135 = scalar_lea.vmem %s0, %s134
      $region28: #{net_forward.4} parent=23 // pred_fallthru
        _
    $region24: #{net_forward.4} parent=5 // pred_fallthru
      _
    %p136 = scmp.le.s32.totalorder 1, %s9
    %p137 = scmp.lt.s32.totalorder %s9, 3
    %p138 = pnand %p136, %p137
    %p139 = pneg %p138
    // Predicated region
    $region29: #{net_forward.4} parent=5 // pred_check
      _
    $region30: #{net_forward.4} parent=5 // pred_check_branch
      %141 = sbr.rel (%p138) target = $region32
    $region31: #{net_forward.4} parent=5 // pred_region
      %s142 = ssub.s32 %s9, 1
      %p143 = scmp.lt.s32.totalorder %s14, 1
      %s144 = scalar_select %p143, %s14, 1
      %s145 = smul.addr %s144, 4
      %s146 = smul.addr %s145, 4
      %s147 = scalar_lea.vmem %s0, %s146
      %p148 = pneg %p35
      %p149 = pneg %p32
      %p150 = pneg %p56
      %p151 = pneg %p53
      %p152 = pneg %p77
      %p153 = pneg %p74
      %p154 = pneg %p103
      %p155 = pneg %p100
      %p156 = scmp.lt.s32.totalorder %s14, 1
      %s157 = scalar_select %p156, %s14, 1
      %s158 = smul.addr %s157, 4
      %s159 = scalar_lea.vmem %s3, %s158
      %p160 = scmp.lt.s32.totalorder %s14, 1
      %s161 = scalar_select %p160, %s14, 1
      %s162 = smul.addr %s161, 4
      %s163 = smul.addr %s162, 4
      %s164 = scalar_lea.vmem %s0, %s163
      %p165 = scmp.lt.s32.totalorder %s14, 1
      %s166 = scalar_select %p165, %s14, 1
      %s167 = smul.addr %s166, 4
      %s168 = scalar_lea.vmem %s3, %s167
      %v169 = vld [vmem:[%s164] sm:$0xff]
      %v170 = vld [vmem:[%s164 + $0x8] sm:$0xff]
      %v171 = vld [vmem:[%s1] sm:$0xff]
      %v172 = vld [vmem:[%s1 + $0x8] sm:$0xff]
      %v173 = vld [vmem:[%s1 + $0x10] sm:$0xff]
      %v174 = vld [vmem:[%s1 + $0x18] sm:$0xff]
      %v175 = vld [vmem:[%s1 + $0x20] sm:$0xff]
      %v176 = vld [vmem:[%s1 + $0x28] sm:$0xff]
      %v177 = vld [vmem:[%s1 + $0x30] sm:$0xff]
      %v178 = vld [vmem:[%s1 + $0x38] sm:$0xff]
      %v179 = vld [vmem:[%s1 + $0x40] sm:$0xff]
      %v180 = vld [vmem:[%s1 + $0x48] sm:$0xff]
      %v181 = vld [vmem:[%s1 + $0x50] sm:$0xff]
      %v182 = vld [vmem:[%s1 + $0x58] sm:$0xff]
      %v183 = vld [vmem:[%s1 + $0x60] sm:$0xff]
      %v184 = vld [vmem:[%s1 + $0x68] sm:$0xff]
      %v185 = vld [vmem:[%s1 + $0x70] sm:$0xff]
      %v186 = vld [vmem:[%s1 + $0x78] sm:$0xff]
      %v187 = vld [vmem:[%s1 + $0x80] sm:$0xff]
      %v188 = vld [vmem:[%s1 + $0x88] sm:$0xff]
      %v189 = vld [vmem:[%s1 + $0x90] sm:$0xff]
      %v190 = vld [vmem:[%s1 + $0x98] sm:$0xff]
      %v191 = vld [vmem:[%s1 + $0xa0] sm:$0xff]
      %v192 = vld [vmem:[%s1 + $0xa8] sm:$0xff]
      %v193 = vld [vmem:[%s1 + $0xb0] sm:$0xff]
      %v194 = vld [vmem:[%s1 + $0xb8] sm:$0xff]
      %v195 = vld [vmem:[%s1 + $0xc0] sm:$0xff]
      %v196 = vld [vmem:[%s1 + $0xc8] sm:$0xff]
      %v197 = vld [vmem:[%s1 + $0xd0] sm:$0xff]
      %v198 = vld [vmem:[%s1 + $0xd8] sm:$0xff]
      %v199 = vld [vmem:[%s1 + $0xe0] sm:$0xff]
      %v200 = vld [vmem:[%s1 + $0xe8] sm:$0xff]
      %v201 = vld [vmem:[%s1 + $0xf0] sm:$0xff]
      %v202 = vld [vmem:[%s1 + $0xf8] sm:$0xff]
      %v203 = vld [vmem:[%s1 + $0x100] sm:$0xff]
      %v204 = vld [vmem:[%s1 + $0x108] sm:$0xff]
      %v205 = vld [vmem:[%s1 + $0x110] sm:$0xff]
      %v206 = vld [vmem:[%s1 + $0x118] sm:$0xff]
      %v207 = vld [vmem:[%s1 + $0x120] sm:$0xff]
      %v208 = vld [vmem:[%s1 + $0x128] sm:$0xff]
      %v209 = vld [vmem:[%s1 + $0x130] sm:$0xff]
      %v210 = vld [vmem:[%s1 + $0x138] sm:$0xff]
      %v211 = vld [vmem:[%s1 + $0x140] sm:$0xff]
      %v212 = vld [vmem:[%s1 + $0x148] sm:$0xff]
      %v213 = vld [vmem:[%s1 + $0x150] sm:$0xff]
      %v214 = vld [vmem:[%s1 + $0x158] sm:$0xff]
      %v215 = vld [vmem:[%s1 + $0x160] sm:$0xff]
      %v216 = vld [vmem:[%s1 + $0x168] sm:$0xff]
      %v217 = vld [vmem:[%s1 + $0x170] sm:$0xff]
      %v218 = vld [vmem:[%s1 + $0x178] sm:$0xff]
      %v219 = vld [vmem:[%s1 + $0x180] sm:$0xff]
      %v220 = vld [vmem:[%s1 + $0x188] sm:$0xff]
      %v221 = vld [vmem:[%s1 + $0x190] sm:$0xff]
      %v222 = vld [vmem:[%s1 + $0x198] sm:$0xff]
      %v223 = vld [vmem:[%s1 + $0x1a0] sm:$0xff]
      %v224 = vld [vmem:[%s1 + $0x1a8] sm:$0xff]
      %v225 = vld [vmem:[%s1 + $0x1b0] sm:$0xff]
      %v226 = vld [vmem:[%s1 + $0x1b8] sm:$0xff]
      %v227 = vld [vmem:[%s1 + $0x1c0] sm:$0xff]
      %v228 = vld [vmem:[%s1 + $0x1c8] sm:$0xff]
      %v229 = vld [vmem:[%s1 + $0x1d0] sm:$0xff]
      %v230 = vld [vmem:[%s1 + $0x1d8] sm:$0xff]
      %v231 = vld [vmem:[%s1 + $0x1e0] sm:$0xff]
      %v232 = vld [vmem:[%s1 + $0x1e8] sm:$0xff]
      %v233 = vld [vmem:[%s1 + $0x1f0] sm:$0xff]
      %v234 = vld [vmem:[%s1 + $0x1f8] sm:$0xff]
      %v235 = vld [vmem:[%s1 + $0x200] sm:$0xff]
      %v236 = vld [vmem:[%s1 + $0x208] sm:$0xff]
      %v237 = vld [vmem:[%s1 + $0x210] sm:$0xff]
      %v238 = vld [vmem:[%s1 + $0x218] sm:$0xff]
      %v239 = vld [vmem:[%s1 + $0x220] sm:$0xff]
      %v240 = vld [vmem:[%s1 + $0x228] sm:$0xff]
      %v241 = vld [vmem:[%s1 + $0x230] sm:$0xff]
      %v242 = vld [vmem:[%s1 + $0x238] sm:$0xff]
      %v243 = vld [vmem:[%s1 + $0x240] sm:$0xff]
      %v244 = vld [vmem:[%s1 + $0x248] sm:$0xff]
      %v245 = vld [vmem:[%s1 + $0x250] sm:$0xff]
      %v246 = vld [vmem:[%s1 + $0x258] sm:$0xff]
      %v247 = vld [vmem:[%s1 + $0x260] sm:$0xff]
      %v248 = vld [vmem:[%s1 + $0x268] sm:$0xff]
      %v249 = vld [vmem:[%s1 + $0x270] sm:$0xff]
      %v250 = vld [vmem:[%s1 + $0x278] sm:$0xff]
      %v251 = vld [vmem:[%s1 + $0x280] sm:$0xff]
      %v252 = vld [vmem:[%s1 + $0x288] sm:$0xff]
      %v253 = vld [vmem:[%s1 + $0x290] sm:$0xff]
      %v254 = vld [vmem:[%s1 + $0x298] sm:$0xff]
      %v255 = vld [vmem:[%s1 + $0x2a0] sm:$0xff]
      %v256 = vld [vmem:[%s1 + $0x2a8] sm:$0xff]
      %v257 = vld [vmem:[%s1 + $0x2b0] sm:$0xff]
      %v258 = vld [vmem:[%s1 + $0x2b8] sm:$0xff]
      %v259 = vld [vmem:[%s1 + $0x2c0] sm:$0xff]
      %v260 = vld [vmem:[%s1 + $0x2c8] sm:$0xff]
      %v261 = vld [vmem:[%s1 + $0x2d0] sm:$0xff]
      %v262 = vld [vmem:[%s1 + $0x2d8] sm:$0xff]
      %v263 = vld [vmem:[%s1 + $0x2e0] sm:$0xff]
      %v264 = vld [vmem:[%s1 + $0x2e8] sm:$0xff]
      %v265 = vld [vmem:[%s1 + $0x2f0] sm:$0xff]
      %v266 = vld [vmem:[%s1 + $0x2f8] sm:$0xff]
      %v267 = vld [vmem:[%s1 + $0x300] sm:$0xff]
      %v268 = vld [vmem:[%s1 + $0x308] sm:$0xff]
      %v269 = vld [vmem:[%s1 + $0x310] sm:$0xff]
      %v270 = vld [vmem:[%s1 + $0x318] sm:$0xff]
      %v271 = vld [vmem:[%s1 + $0x320] sm:$0xff]
      %v272 = vld [vmem:[%s1 + $0x328] sm:$0xff]
      %v273 = vld [vmem:[%s1 + $0x330] sm:$0xff]
      %v274 = vld [vmem:[%s1 + $0x338] sm:$0xff]
      %v275 = vld [vmem:[%s1 + $0x340] sm:$0xff]
      %v276 = vld [vmem:[%s1 + $0x348] sm:$0xff]
      %v277 = vld [vmem:[%s1 + $0x350] sm:$0xff]
      %v278 = vld [vmem:[%s1 + $0x358] sm:$0xff]
      %v279 = vld [vmem:[%s1 + $0x360] sm:$0xff]
      %v280 = vld [vmem:[%s1 + $0x368] sm:$0xff]
      %v281 = vld [vmem:[%s1 + $0x370] sm:$0xff]
      %v282 = vld [vmem:[%s1 + $0x378] sm:$0xff]
      %v283 = vld [vmem:[%s1 + $0x380] sm:$0xff]
      %v284 = vld [vmem:[%s1 + $0x388] sm:$0xff]
      %v285 = vld [vmem:[%s1 + $0x390] sm:$0xff]
      %v286 = vld [vmem:[%s1 + $0x398] sm:$0xff]
      %v287 = vld [vmem:[%s1 + $0x3a0] sm:$0xff]
      %v288 = vld [vmem:[%s1 + $0x3a8] sm:$0xff]
      %v289 = vld [vmem:[%s1 + $0x3b0] sm:$0xff]
      %v290 = vld [vmem:[%s1 + $0x3b8] sm:$0xff]
      %v291 = vld [vmem:[%s1 + $0x3c0] sm:$0xff]
      %v292 = vld [vmem:[%s1 + $0x3c8] sm:$0xff]
      %v293 = vld [vmem:[%s1 + $0x3d0] sm:$0xff]
      %v294 = vld [vmem:[%s1 + $0x3d8] sm:$0xff]
      %v295 = vld [vmem:[%s1 + $0x3e0] sm:$0xff]
      %v296 = vld [vmem:[%s1 + $0x3e8] sm:$0xff]
      %v299 = vunpack.c.l.b16 %v169
      %v300 = vunpack.c.h.b16 %v169
      %v301 = vunpack.c.l.b16 %v170
      %v302 = vunpack.c.h.b16 %v170
      %v303 = vpack.c.b16 %v299, %v299
      %v304 = vpack.c.b16 %v300, %v300
      %v305 = vpack.c.b16 %v301, %v301
      %v306 = vpack.c.b16 %v302, %v302
      %v436 = vunpack.c.l.b16 %v171
      %v437 = vunpack.c.h.b16 %v171
      %v438 = vunpack.c.l.b16 %v172
      %v439 = vunpack.c.h.b16 %v172
      %v440 = vunpack.c.l.b16 %v173
      %v441 = vunpack.c.h.b16 %v173
      %v442 = vunpack.c.l.b16 %v174
      %v443 = vunpack.c.h.b16 %v174
      %v444 = vunpack.c.l.b16 %v175
      %v445 = vunpack.c.h.b16 %v175
      %v446 = vunpack.c.l.b16 %v176
      %v447 = vunpack.c.h.b16 %v176
      %v448 = vunpack.c.l.b16 %v177
      %v449 = vunpack.c.h.b16 %v177
      %v450 = vunpack.c.l.b16 %v178
      %v451 = vunpack.c.h.b16 %v178
      %v452 = vunpack.c.l.b16 %v179
      %v453 = vunpack.c.h.b16 %v179
      %v454 = vunpack.c.l.b16 %v180
      %v455 = vunpack.c.h.b16 %v180
      %v456 = vunpack.c.l.b16 %v181
      %v457 = vunpack.c.h.b16 %v181
      %v458 = vunpack.c.l.b16 %v182
      %v459 = vunpack.c.h.b16 %v182
      %v460 = vunpack.c.l.b16 %v183
      %v461 = vunpack.c.h.b16 %v183
      %v462 = vunpack.c.l.b16 %v184
      %v463 = vunpack.c.h.b16 %v184
      %v464 = vunpack.c.l.b16 %v185
      %v465 = vunpack.c.h.b16 %v185
      %v466 = vunpack.c.l.b16 %v186
      %v467 = vunpack.c.h.b16 %v186
      %v468 = vunpack.c.l.b16 %v187
      %v469 = vunpack.c.h.b16 %v187
      %v470 = vunpack.c.l.b16 %v188
      %v471 = vunpack.c.h.b16 %v188
      %v472 = vunpack.c.l.b16 %v189
      %v473 = vunpack.c.h.b16 %v189
      %v474 = vunpack.c.l.b16 %v190
      %v475 = vunpack.c.h.b16 %v190
      %v476 = vunpack.c.l.b16 %v191
      %v477 = vunpack.c.h.b16 %v191
      %v478 = vunpack.c.l.b16 %v192
      %v479 = vunpack.c.h.b16 %v192
      %v480 = vunpack.c.l.b16 %v193
      %v481 = vunpack.c.h.b16 %v193
      %v482 = vunpack.c.l.b16 %v194
      %v483 = vunpack.c.h.b16 %v194
      %v484 = vunpack.c.l.b16 %v195
      %v485 = vunpack.c.h.b16 %v195
      %v486 = vunpack.c.l.b16 %v196
      %v487 = vunpack.c.h.b16 %v196
      %v488 = vunpack.c.l.b16 %v197
      %v489 = vunpack.c.h.b16 %v197
      %v490 = vunpack.c.l.b16 %v198
      %v491 = vunpack.c.h.b16 %v198
      %v492 = vunpack.c.l.b16 %v199
      %v493 = vunpack.c.h.b16 %v199
      %v494 = vunpack.c.l.b16 %v200
      %v495 = vunpack.c.h.b16 %v200
      %v496 = vunpack.c.l.b16 %v201
      %v497 = vunpack.c.h.b16 %v201
      %v498 = vunpack.c.l.b16 %v202
      %v499 = vunpack.c.h.b16 %v202
      %v500 = vunpack.c.l.b16 %v203
      %v501 = vunpack.c.h.b16 %v203
      %v502 = vunpack.c.l.b16 %v204
      %v503 = vunpack.c.h.b16 %v204
      %v504 = vunpack.c.l.b16 %v205
      %v505 = vunpack.c.h.b16 %v205
      %v506 = vunpack.c.l.b16 %v206
      %v507 = vunpack.c.h.b16 %v206
      %v508 = vunpack.c.l.b16 %v207
      %v509 = vunpack.c.h.b16 %v207
      %v510 = vunpack.c.l.b16 %v208
      %v511 = vunpack.c.h.b16 %v208
      %v512 = vunpack.c.l.b16 %v209
      %v513 = vunpack.c.h.b16 %v209
      %v514 = vunpack.c.l.b16 %v210
      %v515 = vunpack.c.h.b16 %v210
      %v516 = vunpack.c.l.b16 %v211
      %v517 = vunpack.c.h.b16 %v211
      %v518 = vunpack.c.l.b16 %v212
      %v519 = vunpack.c.h.b16 %v212
      %v520 = vunpack.c.l.b16 %v213
      %v521 = vunpack.c.h.b16 %v213
      %v522 = vunpack.c.l.b16 %v214
      %v523 = vunpack.c.h.b16 %v214
      %v524 = vunpack.c.l.b16 %v215
      %v525 = vunpack.c.h.b16 %v215
      %v526 = vunpack.c.l.b16 %v216
      %v527 = vunpack.c.h.b16 %v216
      %v528 = vunpack.c.l.b16 %v217
      %v529 = vunpack.c.h.b16 %v217
      %v530 = vunpack.c.l.b16 %v218
      %v531 = vunpack.c.h.b16 %v218
      %v532 = vunpack.c.l.b16 %v219
      %v533 = vunpack.c.h.b16 %v219
      %v534 = vunpack.c.l.b16 %v220
      %v535 = vunpack.c.h.b16 %v220
      %v536 = vunpack.c.l.b16 %v221
      %v537 = vunpack.c.h.b16 %v221
      %v538 = vunpack.c.l.b16 %v222
      %v539 = vunpack.c.h.b16 %v222
      %v540 = vunpack.c.l.b16 %v223
      %v541 = vunpack.c.h.b16 %v223
      %v542 = vunpack.c.l.b16 %v224
      %v543 = vunpack.c.h.b16 %v224
      %v544 = vunpack.c.l.b16 %v225
      %v545 = vunpack.c.h.b16 %v225
      %v546 = vunpack.c.l.b16 %v226
      %v547 = vunpack.c.h.b16 %v226
      %v548 = vunpack.c.l.b16 %v227
      %v549 = vunpack.c.h.b16 %v227
      %v550 = vunpack.c.l.b16 %v228
      %v551 = vunpack.c.h.b16 %v228
      %v552 = vunpack.c.l.b16 %v229
      %v553 = vunpack.c.h.b16 %v229
      %v554 = vunpack.c.l.b16 %v230
      %v555 = vunpack.c.h.b16 %v230
      %v556 = vunpack.c.l.b16 %v231
      %v557 = vunpack.c.h.b16 %v231
      %v558 = vunpack.c.l.b16 %v232
      %v559 = vunpack.c.h.b16 %v232
      %v560 = vunpack.c.l.b16 %v233
      %v561 = vunpack.c.h.b16 %v233
      %v562 = vunpack.c.l.b16 %v234
      %v563 = vunpack.c.h.b16 %v234
      %v564 = vunpack.c.l.b16 %v235
      %v565 = vunpack.c.h.b16 %v235
      %v566 = vunpack.c.l.b16 %v236
      %v567 = vunpack.c.h.b16 %v236
      %v568 = vunpack.c.l.b16 %v237
      %v569 = vunpack.c.h.b16 %v237
      %v570 = vunpack.c.l.b16 %v238
      %v571 = vunpack.c.h.b16 %v238
      %v572 = vunpack.c.l.b16 %v239
      %v573 = vunpack.c.h.b16 %v239
      %v574 = vunpack.c.l.b16 %v240
      %v575 = vunpack.c.h.b16 %v240
      %v576 = vunpack.c.l.b16 %v241
      %v577 = vunpack.c.h.b16 %v241
      %v578 = vunpack.c.l.b16 %v242
      %v579 = vunpack.c.h.b16 %v242
      %v580 = vunpack.c.l.b16 %v243
      %v581 = vunpack.c.h.b16 %v243
      %v582 = vunpack.c.l.b16 %v244
      %v583 = vunpack.c.h.b16 %v244
      %v584 = vunpack.c.l.b16 %v245
      %v585 = vunpack.c.h.b16 %v245
      %v586 = vunpack.c.l.b16 %v246
      %v587 = vunpack.c.h.b16 %v246
      %v588 = vunpack.c.l.b16 %v247
      %v589 = vunpack.c.h.b16 %v247
      %v590 = vunpack.c.l.b16 %v248
      %v591 = vunpack.c.h.b16 %v248
      %v592 = vunpack.c.l.b16 %v249
      %v593 = vunpack.c.h.b16 %v249
      %v594 = vunpack.c.l.b16 %v250
      %v595 = vunpack.c.h.b16 %v250
      %v596 = vunpack.c.l.b16 %v251
      %v597 = vunpack.c.h.b16 %v251
      %v598 = vunpack.c.l.b16 %v252
      %v599 = vunpack.c.h.b16 %v252
      %v600 = vunpack.c.l.b16 %v253
      %v601 = vunpack.c.h.b16 %v253
      %v602 = vunpack.c.l.b16 %v254
      %v603 = vunpack.c.h.b16 %v254
      %v604 = vunpack.c.l.b16 %v255
      %v605 = vunpack.c.h.b16 %v255
      %v606 = vunpack.c.l.b16 %v256
      %v607 = vunpack.c.h.b16 %v256
      %v608 = vunpack.c.l.b16 %v257
      %v609 = vunpack.c.h.b16 %v257
      %v610 = vunpack.c.l.b16 %v258
      %v611 = vunpack.c.h.b16 %v258
      %v612 = vunpack.c.l.b16 %v259
      %v613 = vunpack.c.h.b16 %v259
      %v614 = vunpack.c.l.b16 %v260
      %v615 = vunpack.c.h.b16 %v260
      %v616 = vunpack.c.l.b16 %v261
      %v617 = vunpack.c.h.b16 %v261
      %v618 = vunpack.c.l.b16 %v262
      %v619 = vunpack.c.h.b16 %v262
      %v620 = vunpack.c.l.b16 %v263
      %v621 = vunpack.c.h.b16 %v263
      %v622 = vunpack.c.l.b16 %v264
      %v623 = vunpack.c.h.b16 %v264
      %v624 = vunpack.c.l.b16 %v265
      %v625 = vunpack.c.h.b16 %v265
      %v626 = vunpack.c.l.b16 %v266
      %v627 = vunpack.c.h.b16 %v266
      %v628 = vunpack.c.l.b16 %v267
      %v629 = vunpack.c.h.b16 %v267
      %v630 = vunpack.c.l.b16 %v268
      %v631 = vunpack.c.h.b16 %v268
      %v632 = vunpack.c.l.b16 %v269
      %v633 = vunpack.c.h.b16 %v269
      %v634 = vunpack.c.l.b16 %v270
      %v635 = vunpack.c.h.b16 %v270
      %v636 = vunpack.c.l.b16 %v271
      %v637 = vunpack.c.h.b16 %v271
      %v638 = vunpack.c.l.b16 %v272
      %v639 = vunpack.c.h.b16 %v272
      %v640 = vunpack.c.l.b16 %v273
      %v641 = vunpack.c.h.b16 %v273
      %v642 = vunpack.c.l.b16 %v274
      %v643 = vunpack.c.h.b16 %v274
      %v644 = vunpack.c.l.b16 %v275
      %v645 = vunpack.c.h.b16 %v275
      %v646 = vunpack.c.l.b16 %v276
      %v647 = vunpack.c.h.b16 %v276
      %v648 = vunpack.c.l.b16 %v277
      %v649 = vunpack.c.h.b16 %v277
      %v650 = vunpack.c.l.b16 %v278
      %v651 = vunpack.c.h.b16 %v278
      %v652 = vunpack.c.l.b16 %v279
      %v653 = vunpack.c.h.b16 %v279
      %v654 = vunpack.c.l.b16 %v280
      %v655 = vunpack.c.h.b16 %v280
      %v656 = vunpack.c.l.b16 %v281
      %v657 = vunpack.c.h.b16 %v281
      %v658 = vunpack.c.l.b16 %v282
      %v659 = vunpack.c.h.b16 %v282
      %v660 = vunpack.c.l.b16 %v283
      %v661 = vunpack.c.h.b16 %v283
      %v662 = vunpack.c.l.b16 %v284
      %v663 = vunpack.c.h.b16 %v284
      %v664 = vunpack.c.l.b16 %v285
      %v665 = vunpack.c.h.b16 %v285
      %v666 = vunpack.c.l.b16 %v286
      %v667 = vunpack.c.h.b16 %v286
      %v668 = vunpack.c.l.b16 %v287
      %v669 = vunpack.c.h.b16 %v287
      %v670 = vunpack.c.l.b16 %v288
      %v671 = vunpack.c.h.b16 %v288
      %v672 = vunpack.c.l.b16 %v289
      %v673 = vunpack.c.h.b16 %v289
      %v674 = vunpack.c.l.b16 %v290
      %v675 = vunpack.c.h.b16 %v290
      %v676 = vunpack.c.l.b16 %v291
      %v677 = vunpack.c.h.b16 %v291
      %v678 = vunpack.c.l.b16 %v292
      %v679 = vunpack.c.h.b16 %v292
      %v680 = vunpack.c.l.b16 %v293
      %v681 = vunpack.c.h.b16 %v293
      %v682 = vunpack.c.l.b16 %v294
      %v683 = vunpack.c.h.b16 %v294
      %v684 = vunpack.c.l.b16 %v295
      %v685 = vunpack.c.h.b16 %v295
      %v686 = vunpack.c.l.b16 %v296
      %v687 = vunpack.c.h.b16 %v296
      %v688 = vpack.c.b16 %v440, %v436
      %v689 = vpack.c.b16 %v441, %v437
      %v690 = vpack.c.b16 %v442, %v438
      %v691 = vpack.c.b16 %v443, %v439
      %v692 = vpack.c.b16 %v448, %v444
      %v693 = vpack.c.b16 %v449, %v445
      %v694 = vpack.c.b16 %v450, %v446
      %v695 = vpack.c.b16 %v451, %v447
      %v696 = vpack.c.b16 %v456, %v452
      %v697 = vpack.c.b16 %v457, %v453
      %v698 = vpack.c.b16 %v458, %v454
      %v699 = vpack.c.b16 %v459, %v455
      %v700 = vpack.c.b16 %v464, %v460
      %v701 = vpack.c.b16 %v465, %v461
      %v702 = vpack.c.b16 %v466, %v462
      %v703 = vpack.c.b16 %v467, %v463
      %v704 = vpack.c.b16 %v472, %v468
      %v705 = vpack.c.b16 %v473, %v469
      %v706 = vpack.c.b16 %v474, %v470
      %v707 = vpack.c.b16 %v475, %v471
      %v708 = vpack.c.b16 %v480, %v476
      %v709 = vpack.c.b16 %v481, %v477
      %v710 = vpack.c.b16 %v482, %v478
      %v711 = vpack.c.b16 %v483, %v479
      %v712 = vpack.c.b16 %v488, %v484
      %v713 = vpack.c.b16 %v489, %v485
      %v714 = vpack.c.b16 %v490, %v486
      %v715 = vpack.c.b16 %v491, %v487
      %v716 = vpack.c.b16 %v496, %v492
      %v717 = vpack.c.b16 %v497, %v493
      %v718 = vpack.c.b16 %v498, %v494
      %v719 = vpack.c.b16 %v499, %v495
      %v720 = vpack.c.b16 %v504, %v500
      %v721 = vpack.c.b16 %v505, %v501
      %v722 = vpack.c.b16 %v506, %v502
      %v723 = vpack.c.b16 %v507, %v503
      %v724 = vpack.c.b16 %v512, %v508
      %v725 = vpack.c.b16 %v513, %v509
      %v726 = vpack.c.b16 %v514, %v510
      %v727 = vpack.c.b16 %v515, %v511
      %v728 = vpack.c.b16 %v520, %v516
      %v729 = vpack.c.b16 %v521, %v517
      %v730 = vpack.c.b16 %v522, %v518
      %v731 = vpack.c.b16 %v523, %v519
      %v732 = vpack.c.b16 %v528, %v524
      %v733 = vpack.c.b16 %v529, %v525
      %v734 = vpack.c.b16 %v530, %v526
      %v735 = vpack.c.b16 %v531, %v527
      %v736 = vpack.c.b16 %v536, %v532
      %v737 = vpack.c.b16 %v537, %v533
      %v738 = vpack.c.b16 %v538, %v534
      %v739 = vpack.c.b16 %v539, %v535
      %v740 = vpack.c.b16 %v544, %v540
      %v741 = vpack.c.b16 %v545, %v541
      %v742 = vpack.c.b16 %v546, %v542
      %v743 = vpack.c.b16 %v547, %v543
      %v744 = vpack.c.b16 %v552, %v548
      %v745 = vpack.c.b16 %v553, %v549
      %v746 = vpack.c.b16 %v554, %v550
      %v747 = vpack.c.b16 %v555, %v551
      %v748 = vpack.c.b16 %v560, %v556
      %v749 = vpack.c.b16 %v561, %v557
      %v750 = vpack.c.b16 %v562, %v558
      %v751 = vpack.c.b16 %v563, %v559
      %v752 = vpack.c.b16 %v568, %v564
      %v753 = vpack.c.b16 %v569, %v565
      %v754 = vpack.c.b16 %v570, %v566
      %v755 = vpack.c.b16 %v571, %v567
      %v756 = vpack.c.b16 %v576, %v572
      %v757 = vpack.c.b16 %v577, %v573
      %v758 = vpack.c.b16 %v578, %v574
      %v759 = vpack.c.b16 %v579, %v575
      %v760 = vpack.c.b16 %v584, %v580
      %v761 = vpack.c.b16 %v585, %v581
      %v762 = vpack.c.b16 %v586, %v582
      %v763 = vpack.c.b16 %v587, %v583
      %v764 = vpack.c.b16 %v592, %v588
      %v765 = vpack.c.b16 %v593, %v589
      %v766 = vpack.c.b16 %v594, %v590
      %v767 = vpack.c.b16 %v595, %v591
      %v768 = vpack.c.b16 %v600, %v596
      %v769 = vpack.c.b16 %v601, %v597
      %v770 = vpack.c.b16 %v602, %v598
      %v771 = vpack.c.b16 %v603, %v599
      %v772 = vpack.c.b16 %v608, %v604
      %v773 = vpack.c.b16 %v609, %v605
      %v774 = vpack.c.b16 %v610, %v606
      %v775 = vpack.c.b16 %v611, %v607
      %v776 = vpack.c.b16 %v616, %v612
      %v777 = vpack.c.b16 %v617, %v613
      %v778 = vpack.c.b16 %v618, %v614
      %v779 = vpack.c.b16 %v619, %v615
      %v780 = vpack.c.b16 %v624, %v620
      %v781 = vpack.c.b16 %v625, %v621
      %v782 = vpack.c.b16 %v626, %v622
      %v783 = vpack.c.b16 %v627, %v623
      %v784 = vpack.c.b16 %v632, %v628
      %v785 = vpack.c.b16 %v633, %v629
      %v786 = vpack.c.b16 %v634, %v630
      %v787 = vpack.c.b16 %v635, %v631
      %v788 = vpack.c.b16 %v640, %v636
      %v789 = vpack.c.b16 %v641, %v637
      %v790 = vpack.c.b16 %v642, %v638
      %v791 = vpack.c.b16 %v643, %v639
      %v792 = vpack.c.b16 %v648, %v644
      %v793 = vpack.c.b16 %v649, %v645
      %v794 = vpack.c.b16 %v650, %v646
      %v795 = vpack.c.b16 %v651, %v647
      %v796 = vpack.c.b16 %v656, %v652
      %v797 = vpack.c.b16 %v657, %v653
      %v798 = vpack.c.b16 %v658, %v654
      %v799 = vpack.c.b16 %v659, %v655
      %v800 = vpack.c.b16 %v664, %v660
      %v801 = vpack.c.b16 %v665, %v661
      %v802 = vpack.c.b16 %v666, %v662
      %v803 = vpack.c.b16 %v667, %v663
      %v804 = vpack.c.b16 %v672, %v668
      %v805 = vpack.c.b16 %v673, %v669
      %v806 = vpack.c.b16 %v674, %v670
      %v807 = vpack.c.b16 %v675, %v671
      %v808 = vpack.c.b16 %v680, %v676
      %v809 = vpack.c.b16 %v681, %v677
      %v810 = vpack.c.b16 %v682, %v678
      %v811 = vpack.c.b16 %v683, %v679
      %v812 = vpack.c.b16 %v684, %v684
      %v813 = vpack.c.b16 %v685, %v685
      %v814 = vpack.c.b16 %v686, %v686
      %v815 = vpack.c.b16 %v687, %v687
      %vm940 = vcmask 982016
      %v942 = vsel %vm940, %v306, 0
      %vm944 = vcmask 1043456
      %v946 = vsel %vm944, %v812, 0
      %v949 = vsel %vm944, %v813, 0
      %v952 = vsel %vm944, %v814, 0
      %v955 = vsel %vm944, %v815, 0
      %957 = vmatprep.subr.bf16.mxu0 %v717
      %958 = vmatpush1.bf16.msra.mxu0 %v716
      %959 = vmatprep.subr.bf16.mxu0 %v713
      %960 = vmatpush1.bf16.msra.mxu0 %v712
      %961 = vmatprep.subr.bf16.mxu0 %v709
      %962 = vmatpush1.bf16.msra.mxu0 %v708
      %963 = vmatprep.subr.bf16.mxu0 %v705
      %964 = vmatpush1.bf16.msra.mxu0 %v704
      %965 = vmatprep.subr.bf16.mxu0 %v701
      %966 = vmatpush1.bf16.msra.mxu0 %v700
      %967 = vmatprep.subr.bf16.mxu0 %v697
      %968 = vmatpush1.bf16.msra.mxu0 %v696
      %969 = vmatprep.subr.bf16.mxu0 %v693
      %970 = vmatpush1.bf16.msra.mxu0 %v692
      %971 = vmatprep.subr.bf16.mxu0 %v689
      %972 = vmatpush1.bf16.msra.mxu0 %v688
      %973 = vmatprep.subr.bf16.mxu0 %v749
      %974 = vmatpush2.bf16.msra.mxu0 %v748
      %975 = vmatprep.subr.bf16.mxu0 %v745
      %976 = vmatpush2.bf16.msra.mxu0 %v744
      %977 = vmatprep.subr.bf16.mxu0 %v741
      %978 = vmatpush2.bf16.msra.mxu0 %v740
      %979 = vmatprep.subr.bf16.mxu0 %v737
      %980 = vmatpush2.bf16.msra.mxu0 %v736
      %981 = vmatprep.subr.bf16.mxu0 %v733
      %982 = vmatpush2.bf16.msra.mxu0 %v732
      %983 = vmatprep.subr.bf16.mxu0 %v729
      %984 = vmatpush2.bf16.msra.mxu0 %v728
      %985 = vmatprep.subr.bf16.mxu0 %v725
      %986 = vmatpush2.bf16.msra.mxu0 %v724
      %987 = vmatprep.subr.bf16.mxu0 %v721
      %988 = vmatpush2.bf16.msra.mxu0 %v720
      %989 = vmatprep.mubr.bf16.mxu0 %v304
      %990 = vmatmul.mubr.bf16.gmra.mxu0 %v303
      %v991 = vpop.f32.mrf.mxu0
      %v992 = vadd.f32 0.0, %v991
      %v993 = vpop.f32.mrf.mxu0
      %v994 = vadd.f32 0.0, %v993
      %v995 = vpop.f32.mrf.mxu0
      %v996 = vpop.f32.mrf.mxu0
      %997 = vdwg.mxu0
      %998 = vmatprep.subr.bf16.mxu0 %v781
      %999 = vmatpush1.bf16.msra.mxu0 %v780
      %1000 = vmatprep.subr.bf16.mxu0 %v777
      %1001 = vmatpush1.bf16.msra.mxu0 %v776
      %1002 = vmatprep.subr.bf16.mxu0 %v773
      %1003 = vmatpush1.bf16.msra.mxu0 %v772
      %1004 = vmatprep.subr.bf16.mxu0 %v769
      %1005 = vmatpush1.bf16.msra.mxu0 %v768
      %1006 = vmatprep.subr.bf16.mxu0 %v765
      %1007 = vmatpush1.bf16.msra.mxu0 %v764
      %1008 = vmatprep.subr.bf16.mxu0 %v761
      %1009 = vmatpush1.bf16.msra.mxu0 %v760
      %1010 = vmatprep.subr.bf16.mxu0 %v757
      %1011 = vmatpush1.bf16.msra.mxu0 %v756
      %1012 = vmatprep.subr.bf16.mxu0 %v753
      %1013 = vmatpush1.bf16.msra.mxu0 %v752
      %1014 = vmatprep.subr.bf16.mxu0 %v949
      %1015 = vmatpush2.bf16.msra.mxu0 %v946
      %1016 = vmatprep.subr.bf16.mxu0 %v809
      %1017 = vmatpush2.bf16.msra.mxu0 %v808
      %1018 = vmatprep.subr.bf16.mxu0 %v805
      %1019 = vmatpush2.bf16.msra.mxu0 %v804
      %1020 = vmatprep.subr.bf16.mxu0 %v801
      %1021 = vmatpush2.bf16.msra.mxu0 %v800
      %1022 = vmatprep.subr.bf16.mxu0 %v797
      %1023 = vmatpush2.bf16.msra.mxu0 %v796
      %1024 = vmatprep.subr.bf16.mxu0 %v793
      %1025 = vmatpush2.bf16.msra.mxu0 %v792
      %1026 = vmatprep.subr.bf16.mxu0 %v789
      %1027 = vmatpush2.bf16.msra.mxu0 %v788
      %1028 = vmatprep.subr.bf16.mxu0 %v785
      %1029 = vmatpush2.bf16.msra.mxu0 %v784
      %1030 = vmatprep.mubr.bf16.mxu0 %v942
      %1031 = vmatmul.mubr.bf16.gmra.mxu0 %v305
      %v1032 = vpop.f32.mrf.mxu0
      %v1033 = vadd.f32 %v992, %v1032
      %v1034 = vpop.f32.mrf.mxu0
      %v1035 = vadd.f32 %v994, %v1034
      %v1036 = vpop.f32.mrf.mxu0
      %v1037 = vpop.f32.mrf.mxu0
      %1038 = vdwg.mxu0
      %1039 = vmatprep.subr.bf16.mxu0 %v719
      %1040 = vmatpush1.bf16.msra.mxu0 %v718
      %1041 = vmatprep.subr.bf16.mxu0 %v715
      %1042 = vmatpush1.bf16.msra.mxu0 %v714
      %1043 = vmatprep.subr.bf16.mxu0 %v711
      %1044 = vmatpush1.bf16.msra.mxu0 %v710
      %1045 = vmatprep.subr.bf16.mxu0 %v707
      %1046 = vmatpush1.bf16.msra.mxu0 %v706
      %1047 = vmatprep.subr.bf16.mxu0 %v703
      %1048 = vmatpush1.bf16.msra.mxu0 %v702
      %1049 = vmatprep.subr.bf16.mxu0 %v699
      %1050 = vmatpush1.bf16.msra.mxu0 %v698
      %1051 = vmatprep.subr.bf16.mxu0 %v695
      %1052 = vmatpush1.bf16.msra.mxu0 %v694
      %1053 = vmatprep.subr.bf16.mxu0 %v691
      %1054 = vmatpush1.bf16.msra.mxu0 %v690
      %1055 = vmatprep.subr.bf16.mxu0 %v751
      %1056 = vmatpush2.bf16.msra.mxu0 %v750
      %1057 = vmatprep.subr.bf16.mxu0 %v747
      %1058 = vmatpush2.bf16.msra.mxu0 %v746
      %1059 = vmatprep.subr.bf16.mxu0 %v743
      %1060 = vmatpush2.bf16.msra.mxu0 %v742
      %1061 = vmatprep.subr.bf16.mxu0 %v739
      %1062 = vmatpush2.bf16.msra.mxu0 %v738
      %1063 = vmatprep.subr.bf16.mxu0 %v735
      %1064 = vmatpush2.bf16.msra.mxu0 %v734
      %1065 = vmatprep.subr.bf16.mxu0 %v731
      %1066 = vmatpush2.bf16.msra.mxu0 %v730
      %1067 = vmatprep.subr.bf16.mxu0 %v727
      %1068 = vmatpush2.bf16.msra.mxu0 %v726
      %1069 = vmatprep.subr.bf16.mxu0 %v723
      %1070 = vmatpush2.bf16.msra.mxu0 %v722
      %1071 = vmatprep.mubr.bf16.mxu0 %v304
      %1072 = vmatmul.mubr.bf16.gmra.mxu0 %v303
      %v1073 = vpop.f32.mrf.mxu0
      %v1074 = vadd.f32 0.0, %v1073
      %v1075 = vpop.f32.mrf.mxu0
      %v1076 = vadd.f32 0.0, %v1075
      %v1077 = vpop.f32.mrf.mxu0
      %v1078 = vpop.f32.mrf.mxu0
      %1079 = vdwg.mxu0
      %1080 = vmatprep.subr.bf16.mxu0 %v783
      %1081 = vmatpush1.bf16.msra.mxu0 %v782
      %1082 = vmatprep.subr.bf16.mxu0 %v779
      %1083 = vmatpush1.bf16.msra.mxu0 %v778
      %1084 = vmatprep.subr.bf16.mxu0 %v775
      %1085 = vmatpush1.bf16.msra.mxu0 %v774
      %1086 = vmatprep.subr.bf16.mxu0 %v771
      %1087 = vmatpush1.bf16.msra.mxu0 %v770
      %1088 = vmatprep.subr.bf16.mxu0 %v767
      %1089 = vmatpush1.bf16.msra.mxu0 %v766
      %1090 = vmatprep.subr.bf16.mxu0 %v763
      %1091 = vmatpush1.bf16.msra.mxu0 %v762
      %1092 = vmatprep.subr.bf16.mxu0 %v759
      %1093 = vmatpush1.bf16.msra.mxu0 %v758
      %1094 = vmatprep.subr.bf16.mxu0 %v755
      %1095 = vmatpush1.bf16.msra.mxu0 %v754
      %1096 = vmatprep.subr.bf16.mxu0 %v955
      %1097 = vmatpush2.bf16.msra.mxu0 %v952
      %1098 = vmatprep.subr.bf16.mxu0 %v811
      %1099 = vmatpush2.bf16.msra.mxu0 %v810
      %1100 = vmatprep.subr.bf16.mxu0 %v807
      %1101 = vmatpush2.bf16.msra.mxu0 %v806
      %1102 = vmatprep.subr.bf16.mxu0 %v803
      %1103 = vmatpush2.bf16.msra.mxu0 %v802
      %1104 = vmatprep.subr.bf16.mxu0 %v799
      %1105 = vmatpush2.bf16.msra.mxu0 %v798
      %1106 = vmatprep.subr.bf16.mxu0 %v795
      %1107 = vmatpush2.bf16.msra.mxu0 %v794
      %1108 = vmatprep.subr.bf16.mxu0 %v791
      %1109 = vmatpush2.bf16.msra.mxu0 %v790
      %1110 = vmatprep.subr.bf16.mxu0 %v787
      %1111 = vmatpush2.bf16.msra.mxu0 %v786
      %1112 = vmatprep.mubr.bf16.mxu0 %v942
      %1113 = vmatmul.mubr.bf16.gmra.mxu0 %v305
      %v1114 = vpop.f32.mrf.mxu0
      %v1115 = vadd.f32 %v1074, %v1114
      %v1116 = vpop.f32.mrf.mxu0
      %v1117 = vadd.f32 %v1076, %v1116
      %v1118 = vpop.f32.mrf.mxu0
      %v1119 = vpop.f32.mrf.mxu0
      %1120 = vdwg.mxu0
      %v1121 = vmax.f32 %v1033, %v1035
      %v1122 = vmax.f32 %v1115, %v1117
      %v1123 = vmax.f32 %v1121, %v1122
      %v1124 = vld [vmem:[%s2] sm:$0x1]
      %v1126 = vlaneseq
      %v1127 = vshrl.u32 %v1126, 7
      %v1128 = vsub.s32 0, %v1127
      %v1129 = vrot.slane %v1124, %v1128
      %v1131 = vadd.f32 %v1123, %v1129
      %v1132 = vmax.f32 %v1131, 0.0
      %v1133 = vpack.c.bf16 %v1132, %v1132
      %vm1134 = vcmask 650240
      %1135 = vst.msk [vmem:[%s168] sm:$0xf] %vm1134, %v1133
      %p1136 = scmp.lt.s32.totalorder %s14, 1
      %s1137 = scalar_select %p1136, %s14, 1
      %s1138 = smul.addr %s1137, 4
      %s1139 = scalar_lea.vmem %s3, %s1138
      // Predicated region
      $region33: #{net_forward.4} parent=31 // pred_check
        %p1140 = pneg %p100
      $region34: #{net_forward.4} parent=31 // pred_check_branch
        %1142 = sbr.rel (%p1140) target = $region36
      $region35: #{net_forward.4} parent=31 // pred_region
        _
      $region36: #{net_forward.4} parent=31 // pred_fallthru
        _
    $region32: #{net_forward.4} parent=5 // pred_fallthru
      _
    %p1143 = scmp.le.s32.totalorder 2, %s9
    // Predicated region
    $region37: #{net_forward.4} parent=5 // pred_check
      %p1144 = pneg %p1143
    $region38: #{net_forward.4} parent=5 // pred_check_branch
      %1146 = sbr.rel (%p1144) target = $region40
    $region39: #{net_forward.4} parent=5 // pred_region
      %s1147 = ssub.s32 %s9, 2
      // Predicated region
      $region41: #{net_forward.4} parent=39 // pred_check
        %p1148 = pneg %p106
      $region42: #{net_forward.4} parent=39 // pred_check_branch
        %1150 = sbr.rel (%p1148) target = $region44
      $region43: #{net_forward.4} parent=39 // pred_region
        %p1151 = scmp.lt.s32.totalorder %s15, 1
        %s1152 = scalar_select %p1151, %s15, 1
        %s1153 = smul.addr %s1152, 4
        %s1154 = scalar_lea.vmem %s3, %s1153
      $region44: #{net_forward.4} parent=39 // pred_fallthru
        _
    $region40: #{net_forward.4} parent=5 // pred_fallthru
      _
  $region6: #{net_forward.4} parent=0 // loop_footer
    %s13 = sadd.s32 1, %s9
  $region7: #{net_forward.4} parent=0 // loop_footer_branch
    %8 = sbr.rel target = $region3
  $region8: #{net_forward.4} parent=0 // loop_exit
    _

</llo_original>
